<compile_context>
chip_gen: v7x
topology: tpu7x:2x2x1
jax: 0.10.0
libtpu: 0.0.40
codegen_flags: <defaults>
</compile_context>

<pallas_src>
import jax
import jax.numpy as jnp
from jax.experimental import pallas as pl
from jax.experimental.pallas import tpu as pltpu


# ------------------------------------------------------------------ kernel


def _cross_attn_kernel(x_ref, c_ref, wq_ref, bq_ref, wkv_ref, bkv_ref, out_ref,
                       q_sc, m_sc, l_sc, acc_sc):
    """One (batch-tile, S-tile, T-tile) grid step.

    x_ref   : (Bt, St, Dp)   input_seq tile (original dtype, exact passthrough)
    c_ref   : (Bt, Tt, Dp)   condition tile, bf16
    wq_ref  : (Dp, Dp)  bf16 pre-transposed query weight  (x @ wq_t == x @ Wq.T)
    bq_ref  : (1, Dp)   f32
    wkv_ref : (Dp, 2Dp) bf16 pre-transposed fused [Wk.T | Wv.T]
    bkv_ref : (1, 2Dp)  f32  fused [bk | bv]
    out_ref : (Bt, St, 2Dp)  concat([x, attended], -1)
    q_sc    : (Bt, St, Dp)  bf16   Q projection, computed once per (b, s) tile
    m_sc/l_sc : (Bt, St, 1) f32    online-softmax running max / denominator
    acc_sc  : (Bt, St, Dp)  f32    online-softmax numerator accumulator
    """
    Bt, St, Dp = x_ref.shape
    Tt = c_ref.shape[1]
    t = pl.program_id(2)

    @pl.when(t == 0)
    def _init():
        # Q projection once per (b, s) tile; f32 accumulate, one cast to bf16.
        xf = x_ref[...].reshape(Bt * St, Dp).astype(jnp.bfloat16)
        q = jnp.dot(xf, wq_ref[...], preferred_element_type=jnp.float32) + bq_ref[...]
        q_sc[...] = q.reshape(Bt, St, Dp).astype(jnp.bfloat16)
        m_sc[...] = jnp.full(m_sc.shape, -jnp.inf, m_sc.dtype)
        l_sc[...] = jnp.zeros(l_sc.shape, l_sc.dtype)
        acc_sc[...] = jnp.zeros(acc_sc.shape, acc_sc.dtype)

    # Fused K/V projection for this condition tile: one (Bt*Tt, Dp) x (Dp, 2Dp) matmul.
    cf = c_ref[...].reshape(Bt * Tt, Dp)                      # already bf16 (wrapper cast)
    kv = jnp.dot(cf, wkv_ref[...], preferred_element_type=jnp.float32) + bkv_ref[...]
    k = kv[:, :Dp].reshape(Bt, Tt, Dp).astype(jnp.bfloat16)   # lane-tile aligned split
    v = kv[:, Dp:].reshape(Bt, Tt, Dp).astype(jnp.bfloat16)

    # scores = Q K^T with the transpose folded into the MXU contraction (no XLU transpose).
    s = jnp.einsum("bsd,btd->bst", q_sc[...], k, preferred_element_type=jnp.float32)

    # Online (streaming) softmax across condition tiles; stats stay in f32.
    m_new = jnp.maximum(m_sc[...], jnp.max(s, axis=-1, keepdims=True))
    alpha = jnp.exp(m_sc[...] - m_new)
    p = jnp.exp(s - m_new)
    l_sc[...] = alpha * l_sc[...] + jnp.sum(p, axis=-1, keepdims=True)
    acc_sc[...] = alpha * acc_sc[...] + jnp.einsum(
        "bst,btd->bsd", p.astype(jnp.bfloat16), v, preferred_element_type=jnp.float32)
    m_sc[...] = m_new

    @pl.when(t == pl.num_programs(2) - 1)
    def _finalize():
        inv_l = pl.reciprocal(l_sc[...], approx=True)         # EUP slot, ~free
        # Two lane-dense, tile-aligned stores (Dp % 128 == 0): no concat temporary.
        out_ref[:, :, :Dp] = x_ref[...].astype(out_ref.dtype)
        out_ref[:, :, Dp:] = (acc_sc[...] * inv_l).astype(out_ref.dtype)


# ------------------------------------------------------------------ wrapper helpers


def _round_up(n, m):
    return -(-n // m) * m


def _pad_last(x, new_d):
    d = x.shape[-1]
    if d == new_d:
        return x
    pad = [(0, 0)] * (x.ndim - 1) + [(0, new_d - d)]
    return jnp.pad(x, pad)


def _pad_2d(w, rows, cols):
    return jnp.pad(w, ((0, rows - w.shape[0]), (0, cols - w.shape[1])))


def _divisors_desc(n):
    return [d for d in range(n, 0, -1) if n % d == 0]


def _tile_candidates(n, cap):
    """Divisors of n that are sublane-friendly (multiple of 8, or n itself), <= cap."""
    cand = [d for d in range(1, n + 1)
            if n % d == 0 and (d % 8 == 0 or d == n) and d <= cap]
    if not cand:
        cand = [n]
    return sorted(set(cand), reverse=True)


def _vmem_budget_bytes():
    """Generation-aware budget: ~0.78 of physical VMEM.

    ~50 MiB on v7x (64 MiB physical, leaves compiler scratch headroom),
    ~100 MiB on v5e/v6e (128 MiB physical)."""
    try:
        cap = int(pltpu.get_tpu_info().vmem_capacity_bytes)
    except Exception:
        cap = 64 * 1024 * 1024
    return int(0.78 * cap)


def _footprint_bytes(bt, st, tt, dp, x_item, out_item):
    """Per-step VMEM estimate: pipelined blocks + scratch + in-kernel temporaries."""
    weights = dp * dp * 2 + dp * 2 * dp * 2 + 4 * dp + 8 * dp         # single-buffered
    blocks = 2 * (bt * st * dp * x_item                                # x (double buf)
                  + bt * tt * dp * 2                                   # condition bf16
                  + bt * st * 2 * dp * out_item)                       # output
    scratch = bt * st * dp * (2 + 4) + 2 * bt * st * 4                 # q bf16, acc f32, m/l
    temps = (2 * bt * st * tt * 4                                      # scores + probs f32
             + bt * tt * 2 * dp * 4                                    # kv f32
             + bt * st * dp * 4)                                       # q f32 pre-cast
    return weights + blocks + scratch + temps


def _select_tiles(B, S, T, dp, x_item, out_item, budget):
    """Pick (bt, st, tt): VMEM-budget bounded, >= 4 parallel steps when possible."""

    def fits(bt, st, tt):
        return 1.25 * _footprint_bytes(bt, st, tt, dp, x_item, out_item) <= budget

    # Tiny problems: a single grid step beats per-step overhead (~0.35 us/step).
    total_io = B * S * dp * x_item + B * T * dp * 2 + B * S * 2 * dp * out_item
    if total_io <= 512 * 1024 and fits(B, S, T):
        return B, S, T

    st_opts = _tile_candidates(S, 512)
    tt_opts = _tile_candidates(T, 512)
    bt_opts = _divisors_desc(B)

    chosen = None
    for tt_c in tt_opts:            # prefer full condition tiles (fewer softmax passes)
        for st_c in st_opts:        # then large S tiles (lane-dense stores, MXU row fill)
            for bt_c in bt_opts:    # shrink batch first
                if fits(bt_c, st_c, tt_c):
                    chosen = (bt_c, st_c, tt_c)
                    break
            if chosen:
                break
        if chosen:
            break
    if chosen is None:
        chosen = (1, st_opts[-1], tt_opts[-1])
    bt, st, tt = chosen

    # Prefer >= 4 parallel grid steps (pipeline overlap + v7x megacore) while keeping
    # >= 256 projection rows per step (2x256^2 MXU on v6e/v7x; v5e still well fed).
    def n_par(bt_, st_):
        return (B // bt_) * (S // st_)

    while n_par(bt, st) < 4:
        bt_next = next((d for d in bt_opts if d < bt), None)
        st_next = next((d for d in st_opts if d < st), None)
        if bt_next is not None and bt_next * st >= 256:
            bt = bt_next
        elif st_next is not None and bt * st_next >= 256:
            st = st_next
        elif bt_next is not None:
            bt = bt_next
        elif st_next is not None:
            st = st_next
        else:
            break
    return bt, st, tt


# ------------------------------------------------------------------ forward


def diffusion_model_forward(input_seq, condition_seq, params):
    """input_seq: (B, S, D), condition_seq: (B, T, D). Returns (B, S, 2D)."""
    B, S, D = input_seq.shape
    Bc, T, Dc = condition_seq.shape
    assert Bc == B and Dc == D

    dp = _round_up(D, 128)          # lane-aligned feature dim (zero padded)

    # nn.Linear: y = x @ W.T + b.  Pre-transpose once, fuse K/V, zero-pad to dp.
    wq_t = _pad_2d(params["wq"].T, dp, dp).astype(jnp.bfloat16)                # (dp, dp)
    wkv_t = jnp.concatenate(
        [_pad_2d(params["wk"].T, dp, dp), _pad_2d(params["wv"].T, dp, dp)],
        axis=1).astype(jnp.bfloat16)                                           # (dp, 2dp)
    bq = _pad_last(params["bq"], dp).reshape(1, dp).astype(jnp.float32)
    bkv = jnp.concatenate([_pad_last(params["bk"], dp),
                           _pad_last(params["bv"], dp)]
                          ).reshape(1, 2 * dp).astype(jnp.float32)

    x_p = _pad_last(input_seq, dp)                            # keep dtype: exact passthrough
    c_p = _pad_last(condition_seq, dp).astype(jnp.bfloat16)   # halves the condition DMA

    x_item = jnp.dtype(x_p.dtype).itemsize
    out_item = jnp.dtype(input_seq.dtype).itemsize
    budget = _vmem_budget_bytes()
    bt, st, tt = _select_tiles(B, S, T, dp, x_item, out_item, budget)
    nb, ns, nt = B // bt, S // st, T // tt

    est = _footprint_bytes(bt, st, tt, dp, x_item, out_item)
    vmem_limit = int(min(budget, max(2 * est, 16 * 1024 * 1024)))

    cost = pl.CostEstimate(
        flops=int(2 * B * (S * dp * dp + 2 * T * dp * dp + 2 * S * T * dp)),
        transcendentals=int(B * S * T),
        bytes_accessed=int(x_p.size * x_item + c_p.size * 2
                           + B * S * 2 * dp * out_item
                           + wq_t.size * 2 + wkv_t.size * 2))

    def build(single_buffer_weights):
        def const_spec(shape):
            kwargs = {}
            if single_buffer_weights and hasattr(pl, "Buffered"):
                # Constant index map -> block fetched once; the default double buffer
                # would just double resident weight VMEM (matters at large D on v7x).
                kwargs["pipeline_mode"] = pl.Buffered(1)
            return pl.BlockSpec(shape, lambda b, s, t: (0,) * len(shape), **kwargs)

        return pl.pallas_call(
            _cross_attn_kernel,
            out_shape=jax.ShapeDtypeStruct((B, S, 2 * dp), input_seq.dtype),
            grid_spec=pltpu.PrefetchScalarGridSpec(
                num_scalar_prefetch=0,
                grid=(nb, ns, nt),
                in_specs=[
                    pl.BlockSpec((bt, st, dp), lambda b, s, t: (b, s, 0)),   # input_seq
                    pl.BlockSpec((bt, tt, dp), lambda b, s, t: (b, t, 0)),   # condition_seq
                    const_spec((dp, dp)),                                    # wq_t
                    const_spec((1, dp)),                                     # bq
                    const_spec((dp, 2 * dp)),                                # wkv_t
                    const_spec((1, 2 * dp)),                                 # bkv
                ],
                out_specs=pl.BlockSpec((bt, st, 2 * dp), lambda b, s, t: (b, s, 0)),
                scratch_shapes=[
                    pltpu.VMEM((bt, st, dp), jnp.bfloat16),    # Q (per (b,s) tile)
                    pltpu.VMEM((bt, st, 1), jnp.float32),      # m (running max)
                    pltpu.VMEM((bt, st, 1), jnp.float32),      # l (running denominator)
                    pltpu.VMEM((bt, st, dp), jnp.float32),     # acc (numerator)
                ]),
            compiler_params=pltpu.CompilerParams(
                dimension_semantics=("parallel", "parallel", "arbitrary"),
                vmem_limit_bytes=vmem_limit),
            cost_estimate=cost,
        )

    args = (x_p, c_p, wq_t, bq, wkv_t, bkv)
    try:
        out = build(True)(*args)
    except Exception:
        # Fallback for jaxlib versions that reject single-buffered pipeline_mode;
        # identical math, only the weight blocks become double-buffered.
        out = build(False)(*args)

    if dp == D:
        return out
    return jnp.concatenate([out[..., :D], out[..., dp:dp + D]], axis=-1)


# ------------------------------------------------------------------ reference & demo


def init_params(key, latent_dim):
    """Deterministic init mimicking nn.Linear's uniform(-1/sqrt(D), 1/sqrt(D))."""
    ks = jax.random.split(key, 6)
    bound = 1.0 / float(latent_dim) ** 0.5
    u = lambda k, shp: jax.random.uniform(k, shp, jnp.float32, -bound, bound)
    return {
        "wq": u(ks[0], (latent_dim, latent_dim)), "bq": u(ks[1], (latent_dim,)),
        "wk": u(ks[2], (latent_dim, latent_dim)), "bk": u(ks[3], (latent_dim,)),
        "wv": u(ks[4], (latent_dim, latent_dim)), "bv": u(ks[5], (latent_dim,)),
    }


def _reference_forward(input_seq, condition_seq, params, matmul_dtype=jnp.float32):
    """Pure-JAX reference; matmul_dtype=bf16 mirrors the kernel's MXU precision."""
    md, f32 = matmul_dtype, jnp.float32
    x, c = input_seq, condition_seq
    q = jnp.einsum("bsd,ed->bse", x.astype(md), params["wq"].astype(md),
                   preferred_element_type=f32) + params["bq"]
    k = jnp.einsum("btd,ed->bte", c.astype(md), params["wk"].astype(md),
                   preferred_element_type=f32) + params["bk"]
    v = jnp.einsum("btd,ed->bte", c.astype(md), params["wv"].astype(md),
                   preferred_element_type=f32) + params["bv"]
    s = jnp.einsum("bsd,btd->bst", q.astype(md), k.astype(md),
                   preferred_element_type=f32)
    p = jax.nn.softmax(s, axis=-1)
    att = jnp.einsum("bst,btd->bsd", p.astype(md), v.astype(md),
                     preferred_element_type=f32)
    return jnp.concatenate([x, att.astype(x.dtype)], axis=-1)


if __name__ == "__main__":
    # Small demo shape (D=32 exercises the lane-padding path; collapses to 1 grid step).
    B, S, T, D = 2, 8, 8, 32
    key = jax.random.PRNGKey(0)
    k_in, k_cond, k_par = jax.random.split(key, 3)
    input_seq = jax.random.normal(k_in, (B, S, D), jnp.float32)
    condition_seq = jax.random.normal(k_cond, (B, T, D), jnp.float32)
    params = init_params(k_par, D)

    out = jax.block_until_ready(diffusion_model_forward(input_seq, condition_seq, params))
    assert out.shape == (B, S, 2 * D), out.shape
    assert jnp.array_equal(out[..., :D], input_seq)          # exact passthrough half

    ref_bf16 = _reference_forward(input_seq, condition_seq, params, jnp.bfloat16)
    err = float(jnp.max(jnp.abs(out - ref_bf16)))
    assert err < 2e-2, err
    ref_f32 = _reference_forward(input_seq, condition_seq, params)
    err32 = float(jnp.max(jnp.abs(out - ref_f32)))
    assert err32 < 1.5e-1, err32

    # Aligned, production-ish shape: exercises the (batch, S, T) multi-step grid with
    # T as an online-softmax reduction axis and the VMEM-budget tile selection.
    B2, S2, T2, D2 = 2, 256, 768, 128
    k1, k2, k3 = jax.random.split(jax.random.PRNGKey(1), 3)
    x2 = jax.random.normal(k1, (B2, S2, D2), jnp.float32)
    c2 = jax.random.normal(k2, (B2, T2, D2), jnp.float32)
    p2 = init_params(k3, D2)
    out2 = jax.block_until_ready(diffusion_model_forward(x2, c2, p2))
    assert out2.shape == (B2, S2, 2 * D2), out2.shape
    assert jnp.array_equal(out2[..., :D2], x2)
    ref2 = _reference_forward(x2, c2, p2, jnp.bfloat16)
    err2 = float(jnp.max(jnp.abs(out2 - ref2)))
    assert err2 < 5e-2, err2

    print("KERNEL_OK")
</pallas_src>

<mosaic_0001>
module attributes {stable_mosaic.version = 11 : i64} {
  func.func @_cross_attn_kernel(%arg0: i32, %arg1: i32, %arg2: i32, %arg3: memref<2x8x128xf32, #tpu.memory_space<vmem>>, %arg4: memref<2x8x128xbf16, #tpu.memory_space<vmem>>, %arg5: memref<128x128xbf16, #tpu.memory_space<vmem>>, %arg6: memref<1x128xf32, #tpu.memory_space<vmem>>, %arg7: memref<128x256xbf16, #tpu.memory_space<vmem>>, %arg8: memref<1x256xf32, #tpu.memory_space<vmem>>, %arg9: memref<2x8x256xf32, #tpu.memory_space<vmem>>, %arg10: memref<2x8x128xbf16, #tpu.memory_space<vmem>>, %arg11: memref<2x8x1xf32, #tpu.memory_space<vmem>>, %arg12: memref<2x8x1xf32, #tpu.memory_space<vmem>>, %arg13: memref<2x8x128xf32, #tpu.memory_space<vmem>>) attributes {dimension_semantics = [#tpu.dimension_semantics<parallel>, #tpu.dimension_semantics<parallel>, #tpu.dimension_semantics<arbitrary>], iteration_bounds = array<i64: 1, 1, 1>, scalar_prefetch = 0 : i64, scratch_operands = 4 : i64, tpu.core_type = #tpu.core_type<tc>, window_params = [{transform_indices = @transform_0, window_bounds = array<i64: 2, 8, 128>}, {transform_indices = @transform_1, window_bounds = array<i64: 2, 8, 128>}, {pipeline_mode = #tpu.pipeline_mode<synchronous>, transform_indices = @transform_2, window_bounds = array<i64: 128, 128>}, {pipeline_mode = #tpu.pipeline_mode<synchronous>, transform_indices = @transform_3, window_bounds = array<i64: 1, 128>}, {pipeline_mode = #tpu.pipeline_mode<synchronous>, transform_indices = @transform_4, window_bounds = array<i64: 128, 256>}, {pipeline_mode = #tpu.pipeline_mode<synchronous>, transform_indices = @transform_5, window_bounds = array<i64: 1, 256>}, {transform_indices = @transform_6, window_bounds = array<i64: 2, 8, 256>}]} {
    %c0_i32 = arith.constant 0 : i32
    %0 = arith.cmpi eq, %arg2, %c0_i32 : i32
    %1 = arith.extui %0 : i1 to i32
    %c0_i32_0 = arith.constant 0 : i32
    %2 = arith.cmpi ne, %1, %c0_i32_0 : i32
    scf.if %2 {
      %c0_37 = arith.constant 0 : index
      %c0_38 = arith.constant 0 : index
      %c0_39 = arith.constant 0 : index
      %45 = vector.load %arg3[%c0_37, %c0_38, %c0_39] : memref<2x8x128xf32, #tpu.memory_space<vmem>>, vector<2x8x128xf32>
      %46 = vector.shape_cast %45 : vector<2x8x128xf32> to vector<16x128xf32>
      %47 = arith.truncf %46 : vector<16x128xf32> to vector<16x128xbf16>
      %c0_40 = arith.constant 0 : index
      %c0_41 = arith.constant 0 : index
      %48 = vector.load %arg5[%c0_40, %c0_41] : memref<128x128xbf16, #tpu.memory_space<vmem>>, vector<128x128xbf16>
      %cst_42 = arith.constant dense<0.000000e+00> : vector<16x128xf32>
      %49 = tpu.matmul %47, %48, %cst_42 {dimension_numbers = #tpu.dot_dimension_numbers<[1], [0], [0], [1], [0, 0, 1, 1], [], []>} : vector<16x128xbf16>, vector<128x128xbf16>, vector<16x128xf32> -> vector<16x128xf32>
      %c0_43 = arith.constant 0 : index
      %c0_44 = arith.constant 0 : index
      %50 = vector.load %arg6[%c0_43, %c0_44] : memref<1x128xf32, #tpu.memory_space<vmem>>, vector<1x128xf32>
      %51 = vector.broadcast %50 : vector<1x128xf32> to vector<16x128xf32>
      %52 = arith.addf %49, %51 : vector<16x128xf32>
      %53 = vector.shape_cast %52 : vector<16x128xf32> to vector<2x8x128xf32>
      %54 = arith.truncf %53 : vector<2x8x128xf32> to vector<2x8x128xbf16>
      %c0_45 = arith.constant 0 : index
      %c0_46 = arith.constant 0 : index
      %c0_47 = arith.constant 0 : index
      %55 = vector.load %arg10[%c0_45, %c0_46, %c0_47] : memref<2x8x128xbf16, #tpu.memory_space<vmem>>, vector<2x8x128xbf16>
      tpu.vector_store %arg10[%c0_45, %c0_46, %c0_47], %54 {strides = array<i32>} : memref<2x8x128xbf16, #tpu.memory_space<vmem>>, vector<2x8x128xbf16>,
      %cst_48 = arith.constant 0xFF800000 : f32
      %56 = vector.broadcast %cst_48 : f32 to vector<2x8x1xf32>
      %c0_49 = arith.constant 0 : index
      %c0_50 = arith.constant 0 : index
      %c0_51 = arith.constant 0 : index
      %57 = vector.load %arg11[%c0_49, %c0_50, %c0_51] : memref<2x8x1xf32, #tpu.memory_space<vmem>>, vector<2x8x1xf32>
      tpu.vector_store %arg11[%c0_49, %c0_50, %c0_51], %56 {strides = array<i32>} : memref<2x8x1xf32, #tpu.memory_space<vmem>>, vector<2x8x1xf32>,
      %cst_52 = arith.constant 0.000000e+00 : f32
      %58 = vector.broadcast %cst_52 : f32 to vector<2x8x1xf32>
      %c0_53 = arith.constant 0 : index
      %c0_54 = arith.constant 0 : index
      %c0_55 = arith.constant 0 : index
      %59 = vector.load %arg12[%c0_53, %c0_54, %c0_55] : memref<2x8x1xf32, #tpu.memory_space<vmem>>, vector<2x8x1xf32>
      tpu.vector_store %arg12[%c0_53, %c0_54, %c0_55], %58 {strides = array<i32>} : memref<2x8x1xf32, #tpu.memory_space<vmem>>, vector<2x8x1xf32>,
      %cst_56 = arith.constant 0.000000e+00 : f32
      %60 = vector.broadcast %cst_56 : f32 to vector<2x8x128xf32>
      %c0_57 = arith.constant 0 : index
      %c0_58 = arith.constant 0 : index
      %c0_59 = arith.constant 0 : index
      %61 = vector.load %arg13[%c0_57, %c0_58, %c0_59] : memref<2x8x128xf32, #tpu.memory_space<vmem>>, vector<2x8x128xf32>
      tpu.vector_store %arg13[%c0_57, %c0_58, %c0_59], %60 {strides = array<i32>} : memref<2x8x128xf32, #tpu.memory_space<vmem>>, vector<2x8x128xf32>,
    } else {
    }
    %c0 = arith.constant 0 : index
    %c0_1 = arith.constant 0 : index
    %c0_2 = arith.constant 0 : index
    %3 = vector.load %arg4[%c0, %c0_1, %c0_2] : memref<2x8x128xbf16, #tpu.memory_space<vmem>>, vector<2x8x128xbf16>
    %4 = vector.shape_cast %3 : vector<2x8x128xbf16> to vector<16x128xbf16>
    %c0_3 = arith.constant 0 : index
    %c0_4 = arith.constant 0 : index
    %5 = vector.load %arg7[%c0_3, %c0_4] : memref<128x256xbf16, #tpu.memory_space<vmem>>, vector<128x256xbf16>
    %cst = arith.constant dense<0.000000e+00> : vector<16x256xf32>
    %6 = tpu.matmul %4, %5, %cst {dimension_numbers = #tpu.dot_dimension_numbers<[1], [0], [0], [1], [0, 0, 1, 1], [], []>} : vector<16x128xbf16>, vector<128x256xbf16>, vector<16x256xf32> -> vector<16x256xf32>
    %c0_5 = arith.constant 0 : index
    %c0_6 = arith.constant 0 : index
    %7 = vector.load %arg8[%c0_5, %c0_6] : memref<1x256xf32, #tpu.memory_space<vmem>>, vector<1x256xf32>
    %8 = vector.broadcast %7 : vector<1x256xf32> to vector<16x256xf32>
    %9 = arith.addf %6, %8 : vector<16x256xf32>
    %10 = vector.extract_strided_slice %9 {offsets = [0, 0], sizes = [16, 128], strides = [1, 1]} : vector<16x256xf32> to vector<16x128xf32>
    %11 = vector.shape_cast %10 : vector<16x128xf32> to vector<2x8x128xf32>
    %12 = arith.truncf %11 : vector<2x8x128xf32> to vector<2x8x128xbf16>
    %13 = vector.extract_strided_slice %9 {offsets = [0, 128], sizes = [16, 128], strides = [1, 1]} : vector<16x256xf32> to vector<16x128xf32>
    %14 = vector.shape_cast %13 : vector<16x128xf32> to vector<2x8x128xf32>
    %15 = arith.truncf %14 : vector<2x8x128xf32> to vector<2x8x128xbf16>
    %c0_7 = arith.constant 0 : index
    %c0_8 = arith.constant 0 : index
    %c0_9 = arith.constant 0 : index
    %16 = vector.load %arg10[%c0_7, %c0_8, %c0_9] : memref<2x8x128xbf16, #tpu.memory_space<vmem>>, vector<2x8x128xbf16>
    "tpu.trace_start"() <{level = 10 : i32, message = "bsd,btd->bst"}> : () -> ()
    %cst_10 = arith.constant dense<0.000000e+00> : vector<2x8x8xf32>
    %17 = tpu.matmul %16, %12, %cst_10 {dimension_numbers = #tpu.dot_dimension_numbers<[2], [2], [1], [1], [0, 0, 0, 1, 1, 1], [0], [0]>} : vector<2x8x128xbf16>, vector<2x8x128xbf16>, vector<2x8x8xf32> -> vector<2x8x8xf32>
    "tpu.trace_stop"() : () -> ()
    %c0_11 = arith.constant 0 : index
    %c0_12 = arith.constant 0 : index
    %c0_13 = arith.constant 0 : index
    %18 = vector.load %arg11[%c0_11, %c0_12, %c0_13] : memref<2x8x1xf32, #tpu.memory_space<vmem>>, vector<2x8x1xf32>
    %cst_14 = arith.constant dense<0xFF800000> : vector<2x8xf32>
    %19 = vector.multi_reduction <maximumf>, %17, %cst_14 [2] : vector<2x8x8xf32> to vector<2x8xf32>
    %20 = vector.shape_cast %19 : vector<2x8xf32> to vector<2x8x1xf32>
    %21 = arith.maximumf %18, %20 : vector<2x8x1xf32>
    %c0_15 = arith.constant 0 : index
    %c0_16 = arith.constant 0 : index
    %c0_17 = arith.constant 0 : index
    %22 = vector.load %arg11[%c0_15, %c0_16, %c0_17] : memref<2x8x1xf32, #tpu.memory_space<vmem>>, vector<2x8x1xf32>
    %23 = arith.subf %22, %21 : vector<2x8x1xf32>
    %24 = math.exp %23 : vector<2x8x1xf32>
    %25 = vector.broadcast %21 : vector<2x8x1xf32> to vector<2x8x8xf32>
    %26 = arith.subf %17, %25 : vector<2x8x8xf32>
    %27 = math.exp %26 : vector<2x8x8xf32>
    %c0_18 = arith.constant 0 : index
    %c0_19 = arith.constant 0 : index
    %c0_20 = arith.constant 0 : index
    %28 = vector.load %arg12[%c0_18, %c0_19, %c0_20] : memref<2x8x1xf32, #tpu.memory_space<vmem>>, vector<2x8x1xf32>
    %29 = arith.mulf %24, %28 : vector<2x8x1xf32>
    %cst_21 = arith.constant dense<0.000000e+00> : vector<2x8xf32>
    %30 = vector.multi_reduction <add>, %27, %cst_21 [2] : vector<2x8x8xf32> to vector<2x8xf32>
    %31 = vector.shape_cast %30 : vector<2x8xf32> to vector<2x8x1xf32>
    %32 = arith.addf %29, %31 : vector<2x8x1xf32>
    %c0_22 = arith.constant 0 : index
    %c0_23 = arith.constant 0 : index
    %c0_24 = arith.constant 0 : index
    %33 = vector.load %arg12[%c0_22, %c0_23, %c0_24] : memref<2x8x1xf32, #tpu.memory_space<vmem>>, vector<2x8x1xf32>
    tpu.vector_store %arg12[%c0_22, %c0_23, %c0_24], %32 {strides = array<i32>} : memref<2x8x1xf32, #tpu.memory_space<vmem>>, vector<2x8x1xf32>,
    %c0_25 = arith.constant 0 : index
    %c0_26 = arith.constant 0 : index
    %c0_27 = arith.constant 0 : index
    %34 = vector.load %arg13[%c0_25, %c0_26, %c0_27] : memref<2x8x128xf32, #tpu.memory_space<vmem>>, vector<2x8x128xf32>
    %35 = vector.broadcast %24 : vector<2x8x1xf32> to vector<2x8x128xf32>
    %36 = arith.mulf %35, %34 : vector<2x8x128xf32>
    %37 = arith.truncf %27 : vector<2x8x8xf32> to vector<2x8x8xbf16>
    "tpu.trace_start"() <{level = 10 : i32, message = "bst,btd->bsd"}> : () -> ()
    %cst_28 = arith.constant dense<0.000000e+00> : vector<2x8x128xf32>
    %38 = tpu.matmul %37, %15, %cst_28 {dimension_numbers = #tpu.dot_dimension_numbers<[2], [1], [1], [2], [0, 0, 0, 1, 1, 2], [0], [0]>} : vector<2x8x8xbf16>, vector<2x8x128xbf16>, vector<2x8x128xf32> -> vector<2x8x128xf32>
    "tpu.trace_stop"() : () -> ()
    %39 = arith.addf %36, %38 : vector<2x8x128xf32>
    %c0_29 = arith.constant 0 : index
    %c0_30 = arith.constant 0 : index
    %c0_31 = arith.constant 0 : index
    %40 = vector.load %arg13[%c0_29, %c0_30, %c0_31] : memref<2x8x128xf32, #tpu.memory_space<vmem>>, vector<2x8x128xf32>
    tpu.vector_store %arg13[%c0_29, %c0_30, %c0_31], %39 {strides = array<i32>} : memref<2x8x128xf32, #tpu.memory_space<vmem>>, vector<2x8x128xf32>,
    %c0_32 = arith.constant 0 : index
    %c0_33 = arith.constant 0 : index
    %c0_34 = arith.constant 0 : index
    %41 = vector.load %arg11[%c0_32, %c0_33, %c0_34] : memref<2x8x1xf32, #tpu.memory_space<vmem>>, vector<2x8x1xf32>
    tpu.vector_store %arg11[%c0_32, %c0_33, %c0_34], %21 {strides = array<i32>} : memref<2x8x1xf32, #tpu.memory_space<vmem>>, vector<2x8x1xf32>,
    %c0_i32_35 = arith.constant 0 : i32
    %42 = arith.cmpi eq, %arg2, %c0_i32_35 : i32
    %43 = arith.extui %42 : i1 to i32
    %c0_i32_36 = arith.constant 0 : i32
    %44 = arith.cmpi ne, %43, %c0_i32_36 : i32
    scf.if %44 {
      %c0_37 = arith.constant 0 : index
      %c0_38 = arith.constant 0 : index
      %c0_39 = arith.constant 0 : index
      %45 = vector.load %arg12[%c0_37, %c0_38, %c0_39] : memref<2x8x1xf32, #tpu.memory_space<vmem>>, vector<2x8x1xf32>
      %46 = tpu.reciprocal %45 {approx = true} : vector<2x8x1xf32> -> vector<2x8x1xf32>
      %c0_40 = arith.constant 0 : index
      %c0_41 = arith.constant 0 : index
      %c0_42 = arith.constant 0 : index
      %47 = vector.load %arg3[%c0_40, %c0_41, %c0_42] : memref<2x8x128xf32, #tpu.memory_space<vmem>>, vector<2x8x128xf32>
      %c0_43 = arith.constant 0 : index
      %c0_44 = arith.constant 0 : index
      %c0_45 = arith.constant 0 : index
      %48 = vector.load %arg9[%c0_43, %c0_44, %c0_45] : memref<2x8x256xf32, #tpu.memory_space<vmem>>, vector<2x8x128xf32>
      tpu.vector_store %arg9[%c0_43, %c0_44, %c0_45], %47 {strides = array<i32>} : memref<2x8x256xf32, #tpu.memory_space<vmem>>, vector<2x8x128xf32>,
      %c0_46 = arith.constant 0 : index
      %c0_47 = arith.constant 0 : index
      %c0_48 = arith.constant 0 : index
      %49 = vector.load %arg13[%c0_46, %c0_47, %c0_48] : memref<2x8x128xf32, #tpu.memory_space<vmem>>, vector<2x8x128xf32>
      %50 = vector.broadcast %46 : vector<2x8x1xf32> to vector<2x8x128xf32>
      %51 = arith.mulf %49, %50 : vector<2x8x128xf32>
      %c0_49 = arith.constant 0 : index
      %c0_50 = arith.constant 0 : index
      %c128 = arith.constant 128 : index
      %52 = vector.load %arg9[%c0_49, %c0_50, %c128] : memref<2x8x256xf32, #tpu.memory_space<vmem>>, vector<2x8x128xf32>
      tpu.vector_store %arg9[%c0_49, %c0_50, %c128], %51 {strides = array<i32>} : memref<2x8x256xf32, #tpu.memory_space<vmem>>, vector<2x8x128xf32>,
    } else {
    }
    return
  }
  func.func @transform_0(%arg0: i32, %arg1: i32, %arg2: i32) -> (i32, i32, i32) {
    %c0_i32 = arith.constant 0 : i32
    %c0_i32_0 = arith.constant 0 : i32
    return %arg0, %arg1, %c0_i32 : i32, i32, i32
  }
  func.func @transform_1(%arg0: i32, %arg1: i32, %arg2: i32) -> (i32, i32, i32) {
    %c0_i32 = arith.constant 0 : i32
    %c0_i32_0 = arith.constant 0 : i32
    return %arg0, %arg2, %c0_i32 : i32, i32, i32
  }
  func.func @transform_2(%arg0: i32, %arg1: i32, %arg2: i32) -> (i32, i32) {
    %c0_i32 = arith.constant 0 : i32
    %c0_i32_0 = arith.constant 0 : i32
    %c0_i32_1 = arith.constant 0 : i32
    return %c0_i32, %c0_i32_0 : i32, i32
  }
  func.func @transform_3(%arg0: i32, %arg1: i32, %arg2: i32) -> (i32, i32) {
    %c0_i32 = arith.constant 0 : i32
    %c0_i32_0 = arith.constant 0 : i32
    %c0_i32_1 = arith.constant 0 : i32
    return %c0_i32, %c0_i32_0 : i32, i32
  }
  func.func @transform_4(%arg0: i32, %arg1: i32, %arg2: i32) -> (i32, i32) {
    %c0_i32 = arith.constant 0 : i32
    %c0_i32_0 = arith.constant 0 : i32
    %c0_i32_1 = arith.constant 0 : i32
    return %c0_i32, %c0_i32_0 : i32, i32
  }
  func.func @transform_5(%arg0: i32, %arg1: i32, %arg2: i32) -> (i32, i32) {
    %c0_i32 = arith.constant 0 : i32
    %c0_i32_0 = arith.constant 0 : i32
    %c0_i32_1 = arith.constant 0 : i32
    return %c0_i32, %c0_i32_0 : i32, i32
  }
  func.func @transform_6(%arg0: i32, %arg1: i32, %arg2: i32) -> (i32, i32, i32) {
    %c0_i32 = arith.constant 0 : i32
    %c0_i32_0 = arith.constant 0 : i32
    return %arg0, %arg1, %c0_i32 : i32, i32, i32
  }
}

module attributes {stable_mosaic.version = 11 : i64} {
  func.func @_cross_attn_kernel(%arg0: i32, %arg1: i32, %arg2: i32, %arg3: memref<2x8x128xf32, #tpu.memory_space<vmem>>, %arg4: memref<2x8x128xbf16, #tpu.memory_space<vmem>>, %arg5: memref<128x128xbf16, #tpu.memory_space<vmem>>, %arg6: memref<1x128xf32, #tpu.memory_space<vmem>>, %arg7: memref<128x256xbf16, #tpu.memory_space<vmem>>, %arg8: memref<1x256xf32, #tpu.memory_space<vmem>>, %arg9: memref<2x8x256xf32, #tpu.memory_space<vmem>>, %arg10: memref<2x8x128xbf16, #tpu.memory_space<vmem>>, %arg11: memref<2x8x1xf32, #tpu.memory_space<vmem>>, %arg12: memref<2x8x1xf32, #tpu.memory_space<vmem>>, %arg13: memref<2x8x128xf32, #tpu.memory_space<vmem>>) attributes {dimension_semantics = [#tpu.dimension_semantics<parallel>, #tpu.dimension_semantics<parallel>, #tpu.dimension_semantics<arbitrary>], iteration_bounds = array<i64: 1, 1, 1>, scalar_prefetch = 0 : i64, scratch_operands = 4 : i64, tpu.core_type = #tpu.core_type<tc>, window_params = [{transform_indices = @transform_0, window_bounds = array<i64: 2, 8, 128>}, {transform_indices = @transform_1, window_bounds = array<i64: 2, 8, 128>}, {pipeline_mode = #tpu.pipeline_mode<synchronous>, transform_indices = @transform_2, window_bounds = array<i64: 128, 128>}, {pipeline_mode = #tpu.pipeline_mode<synchronous>, transform_indices = @transform_3, window_bounds = array<i64: 1, 128>}, {pipeline_mode = #tpu.pipeline_mode<synchronous>, transform_indices = @transform_4, window_bounds = array<i64: 128, 256>}, {pipeline_mode = #tpu.pipeline_mode<synchronous>, transform_indices = @transform_5, window_bounds = array<i64: 1, 256>}, {transform_indices = @transform_6, window_bounds = array<i64: 2, 8, 256>}]} {
    %c0_i32 = arith.constant 0 : i32
    %0 = arith.cmpi eq, %arg2, %c0_i32 : i32
    %1 = arith.extui %0 : i1 to i32
    %c0_i32_0 = arith.constant 0 : i32
    %2 = arith.cmpi ne, %1, %c0_i32_0 : i32
    scf.if %2 {
      %c0_37 = arith.constant 0 : index
      %c0_38 = arith.constant 0 : index
      %c0_39 = arith.constant 0 : index
      %45 = vector.load %arg3[%c0_37, %c0_38, %c0_39] : memref<2x8x128xf32, #tpu.memory_space<vmem>>, vector<2x8x128xf32>
      %46 = vector.shape_cast %45 : vector<2x8x128xf32> to vector<16x128xf32>
      %47 = arith.truncf %46 : vector<16x128xf32> to vector<16x128xbf16>
      %c0_40 = arith.constant 0 : index
      %c0_41 = arith.constant 0 : index
      %48 = vector.load %arg5[%c0_40, %c0_41] : memref<128x128xbf16, #tpu.memory_space<vmem>>, vector<128x128xbf16>
      %cst_42 = arith.constant dense<0.000000e+00> : vector<16x128xf32>
      %49 = tpu.matmul %47, %48, %cst_42 {dimension_numbers = #tpu.dot_dimension_numbers<[1], [0], [0], [1], [0, 0, 1, 1], [], []>} : vector<16x128xbf16>, vector<128x128xbf16>, vector<16x128xf32> -> vector<16x128xf32>
      %c0_43 = arith.constant 0 : index
      %c0_44 = arith.constant 0 : index
      %50 = vector.load %arg6[%c0_43, %c0_44] : memref<1x128xf32, #tpu.memory_space<vmem>>, vector<1x128xf32>
      %51 = vector.broadcast %50 : vector<1x128xf32> to vector<16x128xf32>
      %52 = arith.addf %49, %51 : vector<16x128xf32>
      %53 = vector.shape_cast %52 : vector<16x128xf32> to vector<2x8x128xf32>
      %54 = arith.truncf %53 : vector<2x8x128xf32> to vector<2x8x128xbf16>
      %c0_45 = arith.constant 0 : index
      %c0_46 = arith.constant 0 : index
      %c0_47 = arith.constant 0 : index
      %55 = vector.load %arg10[%c0_45, %c0_46, %c0_47] : memref<2x8x128xbf16, #tpu.memory_space<vmem>>, vector<2x8x128xbf16>
      tpu.vector_store %arg10[%c0_45, %c0_46, %c0_47], %54 {strides = array<i32>} : memref<2x8x128xbf16, #tpu.memory_space<vmem>>, vector<2x8x128xbf16>,
      %cst_48 = arith.constant 0xFF800000 : f32
      %56 = vector.broadcast %cst_48 : f32 to vector<2x8x1xf32>
      %c0_49 = arith.constant 0 : index
      %c0_50 = arith.constant 0 : index
      %c0_51 = arith.constant 0 : index
      %57 = vector.load %arg11[%c0_49, %c0_50, %c0_51] : memref<2x8x1xf32, #tpu.memory_space<vmem>>, vector<2x8x1xf32>
      tpu.vector_store %arg11[%c0_49, %c0_50, %c0_51], %56 {strides = array<i32>} : memref<2x8x1xf32, #tpu.memory_space<vmem>>, vector<2x8x1xf32>,
      %cst_52 = arith.constant 0.000000e+00 : f32
      %58 = vector.broadcast %cst_52 : f32 to vector<2x8x1xf32>
      %c0_53 = arith.constant 0 : index
      %c0_54 = arith.constant 0 : index
      %c0_55 = arith.constant 0 : index
      %59 = vector.load %arg12[%c0_53, %c0_54, %c0_55] : memref<2x8x1xf32, #tpu.memory_space<vmem>>, vector<2x8x1xf32>
      tpu.vector_store %arg12[%c0_53, %c0_54, %c0_55], %58 {strides = array<i32>} : memref<2x8x1xf32, #tpu.memory_space<vmem>>, vector<2x8x1xf32>,
      %cst_56 = arith.constant 0.000000e+00 : f32
      %60 = vector.broadcast %cst_56 : f32 to vector<2x8x128xf32>
      %c0_57 = arith.constant 0 : index
      %c0_58 = arith.constant 0 : index
      %c0_59 = arith.constant 0 : index
      %61 = vector.load %arg13[%c0_57, %c0_58, %c0_59] : memref<2x8x128xf32, #tpu.memory_space<vmem>>, vector<2x8x128xf32>
      tpu.vector_store %arg13[%c0_57, %c0_58, %c0_59], %60 {strides = array<i32>} : memref<2x8x128xf32, #tpu.memory_space<vmem>>, vector<2x8x128xf32>,
    } else {
    }
    %c0 = arith.constant 0 : index
    %c0_1 = arith.constant 0 : index
    %c0_2 = arith.constant 0 : index
    %3 = vector.load %arg4[%c0, %c0_1, %c0_2] : memref<2x8x128xbf16, #tpu.memory_space<vmem>>, vector<2x8x128xbf16>
    %4 = vector.shape_cast %3 : vector<2x8x128xbf16> to vector<16x128xbf16>
    %c0_3 = arith.constant 0 : index
    %c0_4 = arith.constant 0 : index
    %5 = vector.load %arg7[%c0_3, %c0_4] : memref<128x256xbf16, #tpu.memory_space<vmem>>, vector<128x256xbf16>
    %cst = arith.constant dense<0.000000e+00> : vector<16x256xf32>
    %6 = tpu.matmul %4, %5, %cst {dimension_numbers = #tpu.dot_dimension_numbers<[1], [0], [0], [1], [0, 0, 1, 1], [], []>} : vector<16x128xbf16>, vector<128x256xbf16>, vector<16x256xf32> -> vector<16x256xf32>
    %c0_5 = arith.constant 0 : index
    %c0_6 = arith.constant 0 : index
    %7 = vector.load %arg8[%c0_5, %c0_6] : memref<1x256xf32, #tpu.memory_space<vmem>>, vector<1x256xf32>
    %8 = vector.broadcast %7 : vector<1x256xf32> to vector<16x256xf32>
    %9 = arith.addf %6, %8 : vector<16x256xf32>
    %10 = vector.extract_strided_slice %9 {offsets = [0, 0], sizes = [16, 128], strides = [1, 1]} : vector<16x256xf32> to vector<16x128xf32>
    %11 = vector.shape_cast %10 : vector<16x128xf32> to vector<2x8x128xf32>
    %12 = arith.truncf %11 : vector<2x8x128xf32> to vector<2x8x128xbf16>
    %13 = vector.extract_strided_slice %9 {offsets = [0, 128], sizes = [16, 128], strides = [1, 1]} : vector<16x256xf32> to vector<16x128xf32>
    %14 = vector.shape_cast %13 : vector<16x128xf32> to vector<2x8x128xf32>
    %15 = arith.truncf %14 : vector<2x8x128xf32> to vector<2x8x128xbf16>
    %c0_7 = arith.constant 0 : index
    %c0_8 = arith.constant 0 : index
    %c0_9 = arith.constant 0 : index
    %16 = vector.load %arg10[%c0_7, %c0_8, %c0_9] : memref<2x8x128xbf16, #tpu.memory_space<vmem>>, vector<2x8x128xbf16>
    "tpu.trace_start"() <{level = 10 : i32, message = "bsd,btd->bst"}> : () -> ()
    %cst_10 = arith.constant dense<0.000000e+00> : vector<2x8x8xf32>
    %17 = tpu.matmul %16, %12, %cst_10 {dimension_numbers = #tpu.dot_dimension_numbers<[2], [2], [1], [1], [0, 0, 0, 1, 1, 1], [0], [0]>} : vector<2x8x128xbf16>, vector<2x8x128xbf16>, vector<2x8x8xf32> -> vector<2x8x8xf32>
    "tpu.trace_stop"() : () -> ()
    %c0_11 = arith.constant 0 : index
    %c0_12 = arith.constant 0 : index
    %c0_13 = arith.constant 0 : index
    %18 = vector.load %arg11[%c0_11, %c0_12, %c0_13] : memref<2x8x1xf32, #tpu.memory_space<vmem>>, vector<2x8x1xf32>
    %cst_14 = arith.constant dense<0xFF800000> : vector<2x8xf32>
    %19 = vector.multi_reduction <maximumf>, %17, %cst_14 [2] : vector<2x8x8xf32> to vector<2x8xf32>
    %20 = vector.shape_cast %19 : vector<2x8xf32> to vector<2x8x1xf32>
    %21 = arith.maximumf %18, %20 : vector<2x8x1xf32>
    %c0_15 = arith.constant 0 : index
    %c0_16 = arith.constant 0 : index
    %c0_17 = arith.constant 0 : index
    %22 = vector.load %arg11[%c0_15, %c0_16, %c0_17] : memref<2x8x1xf32, #tpu.memory_space<vmem>>, vector<2x8x1xf32>
    %23 = arith.subf %22, %21 : vector<2x8x1xf32>
    %24 = math.exp %23 : vector<2x8x1xf32>
    %25 = vector.broadcast %21 : vector<2x8x1xf32> to vector<2x8x8xf32>
    %26 = arith.subf %17, %25 : vector<2x8x8xf32>
    %27 = math.exp %26 : vector<2x8x8xf32>
    %c0_18 = arith.constant 0 : index
    %c0_19 = arith.constant 0 : index
    %c0_20 = arith.constant 0 : index
    %28 = vector.load %arg12[%c0_18, %c0_19, %c0_20] : memref<2x8x1xf32, #tpu.memory_space<vmem>>, vector<2x8x1xf32>
    %29 = arith.mulf %24, %28 : vector<2x8x1xf32>
    %cst_21 = arith.constant dense<0.000000e+00> : vector<2x8xf32>
    %30 = vector.multi_reduction <add>, %27, %cst_21 [2] : vector<2x8x8xf32> to vector<2x8xf32>
    %31 = vector.shape_cast %30 : vector<2x8xf32> to vector<2x8x1xf32>
    %32 = arith.addf %29, %31 : vector<2x8x1xf32>
    %c0_22 = arith.constant 0 : index
    %c0_23 = arith.constant 0 : index
    %c0_24 = arith.constant 0 : index
    %33 = vector.load %arg12[%c0_22, %c0_23, %c0_24] : memref<2x8x1xf32, #tpu.memory_space<vmem>>, vector<2x8x1xf32>
    tpu.vector_store %arg12[%c0_22, %c0_23, %c0_24], %32 {strides = array<i32>} : memref<2x8x1xf32, #tpu.memory_space<vmem>>, vector<2x8x1xf32>,
    %c0_25 = arith.constant 0 : index
    %c0_26 = arith.constant 0 : index
    %c0_27 = arith.constant 0 : index
    %34 = vector.load %arg13[%c0_25, %c0_26, %c0_27] : memref<2x8x128xf32, #tpu.memory_space<vmem>>, vector<2x8x128xf32>
    %35 = vector.broadcast %24 : vector<2x8x1xf32> to vector<2x8x128xf32>
    %36 = arith.mulf %35, %34 : vector<2x8x128xf32>
    %37 = arith.truncf %27 : vector<2x8x8xf32> to vector<2x8x8xbf16>
    "tpu.trace_start"() <{level = 10 : i32, message = "bst,btd->bsd"}> : () -> ()
    %cst_28 = arith.constant dense<0.000000e+00> : vector<2x8x128xf32>
    %38 = tpu.matmul %37, %15, %cst_28 {dimension_numbers = #tpu.dot_dimension_numbers<[2], [1], [1], [2], [0, 0, 0, 1, 1, 2], [0], [0]>} : vector<2x8x8xbf16>, vector<2x8x128xbf16>, vector<2x8x128xf32> -> vector<2x8x128xf32>
    "tpu.trace_stop"() : () -> ()
    %39 = arith.addf %36, %38 : vector<2x8x128xf32>
    %c0_29 = arith.constant 0 : index
    %c0_30 = arith.constant 0 : index
    %c0_31 = arith.constant 0 : index
    %40 = vector.load %arg13[%c0_29, %c0_30, %c0_31] : memref<2x8x128xf32, #tpu.memory_space<vmem>>, vector<2x8x128xf32>
    tpu.vector_store %arg13[%c0_29, %c0_30, %c0_31], %39 {strides = array<i32>} : memref<2x8x128xf32, #tpu.memory_space<vmem>>, vector<2x8x128xf32>,
    %c0_32 = arith.constant 0 : index
    %c0_33 = arith.constant 0 : index
    %c0_34 = arith.constant 0 : index
    %41 = vector.load %arg11[%c0_32, %c0_33, %c0_34] : memref<2x8x1xf32, #tpu.memory_space<vmem>>, vector<2x8x1xf32>
    tpu.vector_store %arg11[%c0_32, %c0_33, %c0_34], %21 {strides = array<i32>} : memref<2x8x1xf32, #tpu.memory_space<vmem>>, vector<2x8x1xf32>,
    %c0_i32_35 = arith.constant 0 : i32
    %42 = arith.cmpi eq, %arg2, %c0_i32_35 : i32
    %43 = arith.extui %42 : i1 to i32
    %c0_i32_36 = arith.constant 0 : i32
    %44 = arith.cmpi ne, %43, %c0_i32_36 : i32
    scf.if %44 {
      %c0_37 = arith.constant 0 : index
      %c0_38 = arith.constant 0 : index
      %c0_39 = arith.constant 0 : index
      %45 = vector.load %arg12[%c0_37, %c0_38, %c0_39] : memref<2x8x1xf32, #tpu.memory_space<vmem>>, vector<2x8x1xf32>
      %46 = tpu.reciprocal %45 {approx = true} : vector<2x8x1xf32> -> vector<2x8x1xf32>
      %c0_40 = arith.constant 0 : index
      %c0_41 = arith.constant 0 : index
      %c0_42 = arith.constant 0 : index
      %47 = vector.load %arg3[%c0_40, %c0_41, %c0_42] : memref<2x8x128xf32, #tpu.memory_space<vmem>>, vector<2x8x128xf32>
      %c0_43 = arith.constant 0 : index
      %c0_44 = arith.constant 0 : index
      %c0_45 = arith.constant 0 : index
      %48 = vector.load %arg9[%c0_43, %c0_44, %c0_45] : memref<2x8x256xf32, #tpu.memory_space<vmem>>, vector<2x8x128xf32>
      tpu.vector_store %arg9[%c0_43, %c0_44, %c0_45], %47 {strides = array<i32>} : memref<2x8x256xf32, #tpu.memory_space<vmem>>, vector<2x8x128xf32>,
      %c0_46 = arith.constant 0 : index
      %c0_47 = arith.constant 0 : index
      %c0_48 = arith.constant 0 : index
      %49 = vector.load %arg13[%c0_46, %c0_47, %c0_48] : memref<2x8x128xf32, #tpu.memory_space<vmem>>, vector<2x8x128xf32>
      %50 = vector.broadcast %46 : vector<2x8x1xf32> to vector<2x8x128xf32>
      %51 = arith.mulf %49, %50 : vector<2x8x128xf32>
      %c0_49 = arith.constant 0 : index
      %c0_50 = arith.constant 0 : index
      %c128 = arith.constant 128 : index
      %52 = vector.load %arg9[%c0_49, %c0_50, %c128] : memref<2x8x256xf32, #tpu.memory_space<vmem>>, vector<2x8x128xf32>
      tpu.vector_store %arg9[%c0_49, %c0_50, %c128], %51 {strides = array<i32>} : memref<2x8x256xf32, #tpu.memory_space<vmem>>, vector<2x8x128xf32>,
    } else {
    }
    return
  }
  func.func @transform_0(%arg0: i32, %arg1: i32, %arg2: i32) -> (i32, i32, i32) {
    %c0_i32 = arith.constant 0 : i32
    %c0_i32_0 = arith.constant 0 : i32
    return %arg0, %arg1, %c0_i32 : i32, i32, i32
  }
  func.func @transform_1(%arg0: i32, %arg1: i32, %arg2: i32) -> (i32, i32, i32) {
    %c0_i32 = arith.constant 0 : i32
    %c0_i32_0 = arith.constant 0 : i32
    return %arg0, %arg2, %c0_i32 : i32, i32, i32
  }
  func.func @transform_2(%arg0: i32, %arg1: i32, %arg2: i32) -> (i32, i32) {
    %c0_i32 = arith.constant 0 : i32
    %c0_i32_0 = arith.constant 0 : i32
    %c0_i32_1 = arith.constant 0 : i32
    return %c0_i32, %c0_i32_0 : i32, i32
  }
  func.func @transform_3(%arg0: i32, %arg1: i32, %arg2: i32) -> (i32, i32) {
    %c0_i32 = arith.constant 0 : i32
    %c0_i32_0 = arith.constant 0 : i32
    %c0_i32_1 = arith.constant 0 : i32
    return %c0_i32, %c0_i32_0 : i32, i32
  }
  func.func @transform_4(%arg0: i32, %arg1: i32, %arg2: i32) -> (i32, i32) {
    %c0_i32 = arith.constant 0 : i32
    %c0_i32_0 = arith.constant 0 : i32
    %c0_i32_1 = arith.constant 0 : i32
    return %c0_i32, %c0_i32_0 : i32, i32
  }
  func.func @transform_5(%arg0: i32, %arg1: i32, %arg2: i32) -> (i32, i32) {
    %c0_i32 = arith.constant 0 : i32
    %c0_i32_0 = arith.constant 0 : i32
    %c0_i32_1 = arith.constant 0 : i32
    return %c0_i32, %c0_i32_0 : i32, i32
  }
  func.func @transform_6(%arg0: i32, %arg1: i32, %arg2: i32) -> (i32, i32, i32) {
    %c0_i32 = arith.constant 0 : i32
    %c0_i32_0 = arith.constant 0 : i32
    return %arg0, %arg1, %c0_i32 : i32, i32, i32
  }
}

</mosaic_0001>

<llo_original>
// kernel: tpu_custom_call.1
$region0: #{tpu_custom_call.1}
  #allocation0 [shape = 'u32[]', space=smem, size = 0x4, offset = 0x4, fixed_abs, tag = 'smem constant byte address 0x4 - core index']
  #allocation1 [shape = 'u32[144,128]{1,0:T(1,128)}', space=vmem, size = 0x12000, scoped, tag = 'internal scratch']
  #allocation2 [shape = 'bf16[2,8,128]{2,1,0:T(8,128)(2,1)}', space=vmem, size = 0x1000, scoped, tag = 'scratch operand']
  #allocation3 [shape = 'f32[2,8,1]{2,1,0:T(8,128)}', space=vmem, size = 0x2000, scoped, tag = 'scratch operand']
  #allocation4 [shape = 'f32[2,8,1]{2,1,0:T(8,128)}', space=vmem, size = 0x2000, scoped, tag = 'scratch operand']
  #allocation5 [shape = 'f32[2,8,128]{2,1,0:T(8,128)}', space=vmem, size = 0x2000, scoped, tag = 'scratch operand']
  %s0 = inlined_call_operand.hbm [shape: f32[2,8,128], index: 0, kind: input, shape index: {}]
  %s1 = inlined_call_operand.hbm [shape: bf16[2,8,128], index: 1, kind: input, shape index: {}]
  %s2 = inlined_call_operand.hbm [shape: bf16[128,128], index: 2, kind: input, shape index: {}]
  %s3 = inlined_call_operand.vmem [shape: f32[1,128], index: 3, kind: input, shape index: {}]
  %s4 = inlined_call_operand.hbm [shape: bf16[128,256], index: 4, kind: input, shape index: {}]
  %s5 = inlined_call_operand.vmem [shape: f32[1,256], index: 5, kind: input, shape index: {}]
  %s6 = inlined_call_operand.hbm [shape: f32[2,8,256], index: 6, kind: output, shape index: {}]
  %s7 = sld [smem:[#allocation0]]
  $region58: #{tpu_custom_call.1} parent=0
    _
  %s9 = ssub.s32 1, %s7
  %s10 = scalar_select 0, %s9, %s7
  $region1: #{tpu_custom_call.1} parent=0
    #allocation6 [shape = 'u8[8192]{0}', space=vmem, size = 0x2000, scoped, tag = 'input window, operand 0, single buffered']
    #allocation7 [shape = 's32[1]{0}', space=sflag, size = 0x4, scoped, tag = 'scoped memory for tpu_custom_call.1']
    #allocation8 [shape = 's32[1]{0}', space=sflag, size = 0x4, scoped, tag = 'scoped memory for tpu_custom_call.1']
    #allocation9 [shape = 'u8[4096]{0}', space=vmem, size = 0x1000, scoped, tag = 'input window, operand 1, single buffered']
    #allocation10 [shape = 's32[1]{0}', space=sflag, size = 0x4, scoped, tag = 'scoped memory for tpu_custom_call.1']
    #allocation11 [shape = 'u8[32768]{0}', space=vmem, size = 0x8000, scoped, tag = 'input window, operand 2, single buffered']
    #allocation12 [shape = 'u8[65536]{0}', space=vmem, size = 0x10000, scoped, tag = 'input window, operand 4, single buffered']
    #allocation13 [shape = 's32[1]{0}', space=sflag, size = 0x4, scoped, tag = 'scoped memory for tpu_custom_call.1']
    #allocation14 [shape = 'u8[16384]{0}', space=vmem, size = 0x4000, scoped, tag = 'output window, operand 0, single buffered']
    %11 = vsyncpa [#allocation7], 0
    %12 = vsyncpa [#allocation10], 0
    %13 = vsyncpa [#allocation13], 0
    %14 = vsyncpa [#allocation8], 0
    // Predicated region
    $region2: #{tpu_custom_call.1} parent=1 // pred_check
      _
    $region3: #{tpu_custom_call.1} parent=1 // pred_check_branch
      %16 = sbr.rel (0) target = $region5
    $region4: #{tpu_custom_call.1} parent=1 // pred_region
      %s18 = ssub.s32 256, 256
      %19 = vsyncadd [#allocation7], %s18
      %s20 = sshll.u32 [#allocation6], 4
      %s21 = int_to_ptr.vmem [resolvable:$true] %s20
      %26 = dma.hbm_to_vmem [thread:$0]  %s0, 256, %s21, [#allocation7], 128, 128, 8
    $region5: #{tpu_custom_call.1} parent=1 // pred_fallthru
      _
    // Predicated region
    $region6: #{tpu_custom_call.1} parent=1 // pred_check
      _
    $region7: #{tpu_custom_call.1} parent=1 // pred_check_branch
      %28 = sbr.rel (0) target = $region9
    $region8: #{tpu_custom_call.1} parent=1 // pred_region
      %s30 = ssub.s32 128, 128
      %31 = vsyncadd [#allocation10], %s30
      %s32 = sshll.u32 [#allocation9], 4
      %s33 = int_to_ptr.vmem [resolvable:$true] %s32
      %38 = dma.hbm_to_vmem [thread:$0]  %s1, 128, %s33, [#allocation10], 64, 64, 4
    $region9: #{tpu_custom_call.1} parent=1 // pred_fallthru
      _
    // Predicated region
    $region10: #{tpu_custom_call.1} parent=1 // pred_check
      _
    $region11: #{tpu_custom_call.1} parent=1 // pred_check_branch
      %40 = sbr.rel (0) target = $region13
    $region12: #{tpu_custom_call.1} parent=1 // pred_region
      %s42 = ssub.s32 1024, 1024
      %43 = vsyncadd [#allocation10], %s42
      %s44 = sshll.u32 [#allocation11], 4
      %s45 = int_to_ptr.vmem [resolvable:$true] %s44
      %50 = dma.hbm_to_vmem [thread:$0]  %s2, 1024, %s45, [#allocation10], 64, 64, 4
    $region13: #{tpu_custom_call.1} parent=1 // pred_fallthru
      _
    // Predicated region
    $region14: #{tpu_custom_call.1} parent=1 // pred_check
      _
    $region15: #{tpu_custom_call.1} parent=1 // pred_check_branch
      %52 = sbr.rel (0) target = $region17
    $region16: #{tpu_custom_call.1} parent=1 // pred_region
      _
    $region17: #{tpu_custom_call.1} parent=1 // pred_fallthru
      _
    // Predicated region
    $region18: #{tpu_custom_call.1} parent=1 // pred_check
      _
    $region19: #{tpu_custom_call.1} parent=1 // pred_check_branch
      %54 = sbr.rel (0) target = $region21
    $region20: #{tpu_custom_call.1} parent=1 // pred_region
      %s56 = ssub.s32 2048, 2048
      %57 = vsyncadd [#allocation13], %s56
      %s58 = sshll.u32 [#allocation12], 4
      %s59 = int_to_ptr.vmem [resolvable:$true] %s58
      %64 = dma.hbm_to_vmem [thread:$0]  %s4, 2048, %s59, [#allocation13], 128, 128, 8
    $region21: #{tpu_custom_call.1} parent=1 // pred_fallthru
      _
    // Predicated region
    $region22: #{tpu_custom_call.1} parent=1 // pred_check
      _
    $region23: #{tpu_custom_call.1} parent=1 // pred_check_branch
      %66 = sbr.rel (0) target = $region25
    $region24: #{tpu_custom_call.1} parent=1 // pred_region
      _
    $region25: #{tpu_custom_call.1} parent=1 // pred_fallthru
      _
    // Predicated region
    $region26: #{tpu_custom_call.1} parent=1 // pred_check
      _
    $region27: #{tpu_custom_call.1} parent=1 // pred_check_branch
      %68 = sbr.rel (0) target = $region29
    $region28: #{tpu_custom_call.1} parent=1 // pred_region
      %69 = dma.done [#allocation7], 256
    $region29: #{tpu_custom_call.1} parent=1 // pred_fallthru
      _
    // Predicated region
    $region30: #{tpu_custom_call.1} parent=1 // pred_check
      _
    $region31: #{tpu_custom_call.1} parent=1 // pred_check_branch
      %71 = sbr.rel (0) target = $region33
    $region32: #{tpu_custom_call.1} parent=1 // pred_region
      %72 = dma.done [#allocation10], 128
    $region33: #{tpu_custom_call.1} parent=1 // pred_fallthru
      _
    // Predicated region
    $region34: #{tpu_custom_call.1} parent=1 // pred_check
      _
    $region35: #{tpu_custom_call.1} parent=1 // pred_check_branch
      %74 = sbr.rel (0) target = $region37
    $region36: #{tpu_custom_call.1} parent=1 // pred_region
      %75 = dma.done [#allocation10], 1024
    $region37: #{tpu_custom_call.1} parent=1 // pred_fallthru
      _
    // Predicated region
    $region38: #{tpu_custom_call.1} parent=1 // pred_check
      _
    $region39: #{tpu_custom_call.1} parent=1 // pred_check_branch
      %77 = sbr.rel (0) target = $region41
    $region40: #{tpu_custom_call.1} parent=1 // pred_region
      %78 = dma.done [#allocation13], 2048
    $region41: #{tpu_custom_call.1} parent=1 // pred_fallthru
      _
    %p80 = scmp.eq.s32.totalorder 0, 0
    // Predicated region
    $region42: #{tpu_custom_call.1} parent=1 // pred_check
      %p81 = pneg %p80
    $region43: #{tpu_custom_call.1} parent=1 // pred_check_branch
      %83 = sbr.rel (%p81) target = $region45
    $region44: #{tpu_custom_call.1} parent=1 // pred_region
      %v84 = vld [vmem:[#allocation6] sm:$0xff]
      %v85 = vld [vmem:[#allocation6 + $0x8] sm:$0xff]
      %v86 = vpack.c.bf16 %v85, %v84
      %v87 = vld [vmem:[#allocation11] sm:$0xf]
      %v88 = vld [vmem:[#allocation11 + $0x4] sm:$0xf]
      %v89 = vld [vmem:[#allocation11 + $0x8] sm:$0xf]
      %v90 = vld [vmem:[#allocation11 + $0xc] sm:$0xf]
      %v91 = vld [vmem:[#allocation11 + $0x10] sm:$0xf]
      %v92 = vld [vmem:[#allocation11 + $0x14] sm:$0xf]
      %v93 = vld [vmem:[#allocation11 + $0x18] sm:$0xf]
      %v94 = vld [vmem:[#allocation11 + $0x1c] sm:$0xf]
      %v95 = vld [vmem:[#allocation11 + $0x20] sm:$0xf]
      %v96 = vld [vmem:[#allocation11 + $0x24] sm:$0xf]
      %v97 = vld [vmem:[#allocation11 + $0x28] sm:$0xf]
      %v98 = vld [vmem:[#allocation11 + $0x2c] sm:$0xf]
      %v99 = vld [vmem:[#allocation11 + $0x30] sm:$0xf]
      %v100 = vld [vmem:[#allocation11 + $0x34] sm:$0xf]
      %v101 = vld [vmem:[#allocation11 + $0x38] sm:$0xf]
      %v102 = vld [vmem:[#allocation11 + $0x3c] sm:$0xf]
      %v103 = vld [vmem:[%s3] sm:$0x1]
      %v105 = vlaneseq
      %v106 = vshrl.u32 %v105, 7
      %v107 = vsub.s32 0, %v106
      %v108 = vrot.slane %v103, %v107
      %v126 = vunpack.c.l.b16 %v87
      %v127 = vunpack.c.l.b16 %v88
      %v128 = vunpack.c.l.b16 %v89
      %v129 = vunpack.c.l.b16 %v90
      %v130 = vunpack.c.l.b16 %v91
      %v131 = vunpack.c.l.b16 %v92
      %v132 = vunpack.c.l.b16 %v93
      %v133 = vunpack.c.l.b16 %v94
      %v134 = vunpack.c.l.b16 %v95
      %v135 = vunpack.c.l.b16 %v96
      %v136 = vunpack.c.l.b16 %v97
      %v137 = vunpack.c.l.b16 %v98
      %v138 = vunpack.c.l.b16 %v99
      %v139 = vunpack.c.l.b16 %v100
      %v140 = vunpack.c.l.b16 %v101
      %v141 = vunpack.c.l.b16 %v102
      %v142 = vpack.c.b16 %v127, %v126
      %v143 = vpack.c.b16 %v129, %v128
      %v144 = vpack.c.b16 %v131, %v130
      %v145 = vpack.c.b16 %v133, %v132
      %v146 = vpack.c.b16 %v135, %v134
      %v147 = vpack.c.b16 %v137, %v136
      %v148 = vpack.c.b16 %v139, %v138
      %v149 = vpack.c.b16 %v141, %v140
      %158 = vmatprep.subr.bf16.mxu0 0
      %159 = vmatpush1.bf16.msra.mxu0 %v142
      %160 = vmatprep.subr.bf16.mxu0 0
      %161 = vmatpush1.bf16.msra.mxu0 %v143
      %162 = vmatprep.subr.bf16.mxu0 0
      %163 = vmatpush1.bf16.msra.mxu0 %v144
      %164 = vmatprep.subr.bf16.mxu0 0
      %165 = vmatpush1.bf16.msra.mxu0 %v145
      %166 = vmatprep.subr.bf16.mxu0 0
      %167 = vmatpush1.bf16.msra.mxu0 %v146
      %168 = vmatprep.subr.bf16.mxu0 0
      %169 = vmatpush1.bf16.msra.mxu0 %v147
      %170 = vmatprep.subr.bf16.mxu0 0
      %171 = vmatpush1.bf16.msra.mxu0 %v148
      %172 = vmatprep.subr.bf16.mxu0 0
      %173 = vmatpush1.bf16.msra.mxu0 %v149
      %174 = vmatprep.subr.bf16.mxu0 0
      %175 = vmatpush1.bf16.msra.mxu0 0
      %176 = vmatprep.subr.bf16.mxu0 0
      %177 = vmatpush1.bf16.msra.mxu0 0
      %178 = vmatprep.subr.bf16.mxu0 0
      %179 = vmatpush1.bf16.msra.mxu0 0
      %180 = vmatprep.subr.bf16.mxu0 0
      %181 = vmatpush1.bf16.msra.mxu0 0
      %182 = vmatprep.subr.bf16.mxu0 0
      %183 = vmatpush1.bf16.msra.mxu0 0
      %184 = vmatprep.subr.bf16.mxu0 0
      %185 = vmatpush1.bf16.msra.mxu0 0
      %186 = vmatprep.subr.bf16.mxu0 0
      %187 = vmatpush1.bf16.msra.mxu0 0
      %188 = vmatprep.subr.bf16.mxu0 0
      %189 = vmatpush1.bf16.msra.mxu0 0
      %190 = vmatprep.mubr.bf16.mxu0 0
      %191 = vmatmul.mubr.bf16.gmra.mrb[0].mxu0 %v86
      %v192 = vpop.f32.mrb[0].mxu0
      %v193 = vadd.f32 %v108, %v192
      %v194 = vpop.f32.mrb[0].mxu0
      %v195 = vpop.f32.mrb[0].mxu0
      %v196 = vadd.f32 %v108, %v195
      %v197 = vpop.f32.mrb[0].mxu0
      %198 = vdwg.mxu0
      %v199 = vpack.c.bf16 %v193, %v193
      %v200 = vpack.c.bf16 %v196, %v196
      %201 = vst [vmem:[#allocation2] sm:$0xf] %v199
      %202 = vst [vmem:[#allocation2 + $0x4] sm:$0xf] %v200
      %vm203 = vcmask 7168
      %204 = vst.msk [vmem:[#allocation3] sm:$0xff] %vm203, -inf
      %205 = vst.msk [vmem:[#allocation3 + $0x8] sm:$0xff] %vm203, -inf
      %206 = vst.msk [vmem:[#allocation4] sm:$0xff] %vm203, 0.0
      %207 = vst.msk [vmem:[#allocation4 + $0x8] sm:$0xff] %vm203, 0.0
      %208 = vst [vmem:[#allocation5] sm:$0xff] 0.0
      %209 = vst [vmem:[#allocation5 + $0x8] sm:$0xff] 0.0
    $region45: #{tpu_custom_call.1} parent=1 // pred_fallthru
      _
    %v210 = vld [vmem:[#allocation9] sm:$0xf]
    %v211 = vld [vmem:[#allocation9 + $0x4] sm:$0xf]
    %v212 = vld [vmem:[#allocation12] sm:$0xff]
    %v213 = vld [vmem:[#allocation12 + $0x8] sm:$0xff]
    %v214 = vld [vmem:[#allocation12 + $0x10] sm:$0xff]
    %v215 = vld [vmem:[#allocation12 + $0x18] sm:$0xff]
    %v216 = vld [vmem:[#allocation12 + $0x20] sm:$0xff]
    %v217 = vld [vmem:[#allocation12 + $0x28] sm:$0xff]
    %v218 = vld [vmem:[#allocation12 + $0x30] sm:$0xff]
    %v219 = vld [vmem:[#allocation12 + $0x38] sm:$0xff]
    %v220 = vld [vmem:[#allocation12 + $0x40] sm:$0xff]
    %v221 = vld [vmem:[#allocation12 + $0x48] sm:$0xff]
    %v222 = vld [vmem:[#allocation12 + $0x50] sm:$0xff]
    %v223 = vld [vmem:[#allocation12 + $0x58] sm:$0xff]
    %v224 = vld [vmem:[#allocation12 + $0x60] sm:$0xff]
    %v225 = vld [vmem:[#allocation12 + $0x68] sm:$0xff]
    %v226 = vld [vmem:[#allocation12 + $0x70] sm:$0xff]
    %v227 = vld [vmem:[#allocation12 + $0x78] sm:$0xff]
    %v228 = vld [vmem:[%s5] sm:$0x3]
    %v230 = vlaneseq
    %v231 = vshrl.u32 %v230, 7
    %v232 = vsub.s32 0, %v231
    %v233 = vrot.slane %v228, %v232
    %v234 = vlaneseq
    %v235 = vshrl.u32 %v234, 7
    %v236 = vsub.s32 1, %v235
    %v237 = vrot.slane %v228, %v236
    %v242 = vunpack.c.l.b16 %v210
    %v243 = vunpack.c.l.b16 %v211
    %v244 = vpack.c.b16 %v243, %v242
    %v262 = vunpack.c.l.b16 %v212
    %v263 = vunpack.c.h.b16 %v212
    %v264 = vunpack.c.l.b16 %v213
    %v265 = vunpack.c.h.b16 %v213
    %v266 = vunpack.c.l.b16 %v214
    %v267 = vunpack.c.h.b16 %v214
    %v268 = vunpack.c.l.b16 %v215
    %v269 = vunpack.c.h.b16 %v215
    %v270 = vunpack.c.l.b16 %v216
    %v271 = vunpack.c.h.b16 %v216
    %v272 = vunpack.c.l.b16 %v217
    %v273 = vunpack.c.h.b16 %v217
    %v274 = vunpack.c.l.b16 %v218
    %v275 = vunpack.c.h.b16 %v218
    %v276 = vunpack.c.l.b16 %v219
    %v277 = vunpack.c.h.b16 %v219
    %v278 = vunpack.c.l.b16 %v220
    %v279 = vunpack.c.h.b16 %v220
    %v280 = vunpack.c.l.b16 %v221
    %v281 = vunpack.c.h.b16 %v221
    %v282 = vunpack.c.l.b16 %v222
    %v283 = vunpack.c.h.b16 %v222
    %v284 = vunpack.c.l.b16 %v223
    %v285 = vunpack.c.h.b16 %v223
    %v286 = vunpack.c.l.b16 %v224
    %v287 = vunpack.c.h.b16 %v224
    %v288 = vunpack.c.l.b16 %v225
    %v289 = vunpack.c.h.b16 %v225
    %v290 = vunpack.c.l.b16 %v226
    %v291 = vunpack.c.h.b16 %v226
    %v292 = vunpack.c.l.b16 %v227
    %v293 = vunpack.c.h.b16 %v227
    %v294 = vpack.c.b16 %v264, %v262
    %v295 = vpack.c.b16 %v265, %v263
    %v296 = vpack.c.b16 %v268, %v266
    %v297 = vpack.c.b16 %v269, %v267
    %v298 = vpack.c.b16 %v272, %v270
    %v299 = vpack.c.b16 %v273, %v271
    %v300 = vpack.c.b16 %v276, %v274
    %v301 = vpack.c.b16 %v277, %v275
    %v302 = vpack.c.b16 %v280, %v278
    %v303 = vpack.c.b16 %v281, %v279
    %v304 = vpack.c.b16 %v284, %v282
    %v305 = vpack.c.b16 %v285, %v283
    %v306 = vpack.c.b16 %v288, %v286
    %v307 = vpack.c.b16 %v289, %v287
    %v308 = vpack.c.b16 %v292, %v290
    %v309 = vpack.c.b16 %v293, %v291
    %326 = vmatprep.subr.bf16.mxu0 %v295
    %327 = vmatpush1.bf16.msra.mxu0 %v294
    %328 = vmatprep.subr.bf16.mxu0 %v297
    %329 = vmatpush1.bf16.msra.mxu0 %v296
    %330 = vmatprep.subr.bf16.mxu0 %v299
    %331 = vmatpush1.bf16.msra.mxu0 %v298
    %332 = vmatprep.subr.bf16.mxu0 %v301
    %333 = vmatpush1.bf16.msra.mxu0 %v300
    %334 = vmatprep.subr.bf16.mxu0 %v303
    %335 = vmatpush1.bf16.msra.mxu0 %v302
    %336 = vmatprep.subr.bf16.mxu0 %v305
    %337 = vmatpush1.bf16.msra.mxu0 %v304
    %338 = vmatprep.subr.bf16.mxu0 %v307
    %339 = vmatpush1.bf16.msra.mxu0 %v306
    %340 = vmatprep.subr.bf16.mxu0 %v309
    %341 = vmatpush1.bf16.msra.mxu0 %v308
    %342 = vmatprep.subr.bf16.mxu0 0
    %343 = vmatpush1.bf16.msra.mxu0 0
    %344 = vmatprep.subr.bf16.mxu0 0
    %345 = vmatpush1.bf16.msra.mxu0 0
    %346 = vmatprep.subr.bf16.mxu0 0
    %347 = vmatpush1.bf16.msra.mxu0 0
    %348 = vmatprep.subr.bf16.mxu0 0
    %349 = vmatpush1.bf16.msra.mxu0 0
    %350 = vmatprep.subr.bf16.mxu0 0
    %351 = vmatpush1.bf16.msra.mxu0 0
    %352 = vmatprep.subr.bf16.mxu0 0
    %353 = vmatpush1.bf16.msra.mxu0 0
    %354 = vmatprep.subr.bf16.mxu0 0
    %355 = vmatpush1.bf16.msra.mxu0 0
    %356 = vmatprep.subr.bf16.mxu0 0
    %357 = vmatpush1.bf16.msra.mxu0 0
    %358 = vmatprep.mubr.bf16.mxu0 0
    %359 = vmatmul.mubr.bf16.gmra.mrb[0].mxu0 %v244
    %v360 = vpop.f32.mrb[0].mxu0
    %v361 = vadd.f32 %v233, %v360
    %v362 = vpop.f32.mrb[0].mxu0
    %v363 = vadd.f32 %v237, %v362
    %v364 = vpop.f32.mrb[0].mxu0
    %v365 = vadd.f32 %v233, %v364
    %v366 = vpop.f32.mrb[0].mxu0
    %v367 = vadd.f32 %v237, %v366
    %368 = vdwg.mxu0
    %v369 = vpack.c.bf16 %v361, %v361
    %v370 = vpack.c.bf16 %v365, %v365
    %v371 = vpack.c.bf16 %v363, %v363
    %v372 = vpack.c.bf16 %v367, %v367
    %v373 = vld [vmem:[#allocation2] sm:$0xf]
    %v374 = vld [vmem:[#allocation2 + $0x4] sm:$0xf]
    %375 = vmatprep.subr.bf16.mxu0 0
    %376 = vmatpush1.bf16.xpose.msra.mxu0 %v369
    %377 = vmatprep.subr.bf16.mxu0 0
    %378 = vmatpush1.bf16.xpose.msra.mxu0 0
    %379 = vmatprep.subr.bf16.mxu0 0
    %380 = vmatpush1.bf16.xpose.msra.mxu0 0
    %381 = vmatprep.subr.bf16.mxu0 0
    %382 = vmatpush1.bf16.xpose.msra.mxu0 0
    %383 = vmatprep.subr.bf16.mxu0 0
    %384 = vmatpush1.bf16.xpose.msra.mxu0 0
    %385 = vmatprep.subr.bf16.mxu0 0
    %386 = vmatpush1.bf16.xpose.msra.mxu0 0
    %387 = vmatprep.subr.bf16.mxu0 0
    %388 = vmatpush1.bf16.xpose.msra.mxu0 0
    %389 = vmatprep.subr.bf16.mxu0 0
    %390 = vmatpush1.bf16.xpose.msra.mxu0 0
    %391 = vmatprep.subr.bf16.mxu0 0
    %392 = vmatpush1.bf16.xpose.msra.mxu0 0
    %393 = vmatprep.subr.bf16.mxu0 0
    %394 = vmatpush1.bf16.xpose.msra.mxu0 0
    %395 = vmatprep.subr.bf16.mxu0 0
    %396 = vmatpush1.bf16.xpose.msra.mxu0 0
    %397 = vmatprep.subr.bf16.mxu0 0
    %398 = vmatpush1.bf16.xpose.msra.mxu0 0
    %399 = vmatprep.subr.bf16.mxu0 0
    %400 = vmatpush1.bf16.xpose.msra.mxu0 0
    %401 = vmatprep.subr.bf16.mxu0 0
    %402 = vmatpush1.bf16.xpose.msra.mxu0 0
    %403 = vmatprep.subr.bf16.mxu0 0
    %404 = vmatpush1.bf16.xpose.msra.mxu0 0
    %405 = vmatprep.subr.bf16.mxu0 0
    %406 = vmatpush1.bf16.xpose.msra.mxu0 0
    %407 = vmatprep.mubr.bf16.mxu0 0
    %408 = vmatmul.mubr.bf16.gmra.mrb[0].mxu0 %v373
    %v409 = vpop.f32.mrb[0].mxu0
    %v410 = vadd.f32 0.0, %v409
    %v411 = vpop.f32.mrb[0].mxu0
    %v412 = vpop.f32.mrb[0].mxu0
    %v413 = vpop.f32.mrb[0].mxu0
    %414 = vdwg.mxu0
    %415 = vmatprep.subr.bf16.mxu0 0
    %416 = vmatpush1.bf16.xpose.msra.mxu0 %v370
    %417 = vmatprep.subr.bf16.mxu0 0
    %418 = vmatpush1.bf16.xpose.msra.mxu0 0
    %419 = vmatprep.subr.bf16.mxu0 0
    %420 = vmatpush1.bf16.xpose.msra.mxu0 0
    %421 = vmatprep.subr.bf16.mxu0 0
    %422 = vmatpush1.bf16.xpose.msra.mxu0 0
    %423 = vmatprep.subr.bf16.mxu0 0
    %424 = vmatpush1.bf16.xpose.msra.mxu0 0
    %425 = vmatprep.subr.bf16.mxu0 0
    %426 = vmatpush1.bf16.xpose.msra.mxu0 0
    %427 = vmatprep.subr.bf16.mxu0 0
    %428 = vmatpush1.bf16.xpose.msra.mxu0 0
    %429 = vmatprep.subr.bf16.mxu0 0
    %430 = vmatpush1.bf16.xpose.msra.mxu0 0
    %431 = vmatprep.subr.bf16.mxu0 0
    %432 = vmatpush1.bf16.xpose.msra.mxu0 0
    %433 = vmatprep.subr.bf16.mxu0 0
    %434 = vmatpush1.bf16.xpose.msra.mxu0 0
    %435 = vmatprep.subr.bf16.mxu0 0
    %436 = vmatpush1.bf16.xpose.msra.mxu0 0
    %437 = vmatprep.subr.bf16.mxu0 0
    %438 = vmatpush1.bf16.xpose.msra.mxu0 0
    %439 = vmatprep.subr.bf16.mxu0 0
    %440 = vmatpush1.bf16.xpose.msra.mxu0 0
    %441 = vmatprep.subr.bf16.mxu0 0
    %442 = vmatpush1.bf16.xpose.msra.mxu0 0
    %443 = vmatprep.subr.bf16.mxu0 0
    %444 = vmatpush1.bf16.xpose.msra.mxu0 0
    %445 = vmatprep.subr.bf16.mxu0 0
    %446 = vmatpush1.bf16.xpose.msra.mxu0 0
    %447 = vmatprep.mubr.bf16.mxu0 0
    %448 = vmatmul.mubr.bf16.gmra.mrb[0].mxu0 %v374
    %v449 = vpop.f32.mrb[0].mxu0
    %v450 = vadd.f32 0.0, %v449
    %v451 = vpop.f32.mrb[0].mxu0
    %v452 = vpop.f32.mrb[0].mxu0
    %v453 = vpop.f32.mrb[0].mxu0
    %454 = vdwg.mxu0
    %v455 = vld [vmem:[#allocation3] sm:$0xff]
    %v456 = vld [vmem:[#allocation3 + $0x8] sm:$0xff]
    %vm457 = vcmask 64512
    %v458 = vsel %vm457, %v410, -inf
    %459 = vmax.xlane.f32.xlu0 %v458
    %v460 = vpop.xlane.xlu0 %459
    %v461 = vsel %vm457, %v450, -inf
    %462 = vmax.xlane.f32.xlu0 %v461
    %v463 = vpop.xlane.xlu0 %462
    %v464 = vmax.f32 %v455, %v460
    %v465 = vmax.f32 %v456, %v463
    %v466 = vsub.f32 %v455, %v464
    %v467 = vsub.f32 %v456, %v465
    %v468 = vmul.f32 %v466, 1.442695
    %v469 = vpow.pop %v468
    %v470 = vmul.f32 %v467, 1.442695
    %v471 = vpow.pop %v470
    %473 = vset.pattern.permute.xlu0 0
    %474 = vperm.xlu0 %473, %v464
    %v475 = vpop.permute.xlu0 %474
    %478 = vset.pattern.permute.xlu0 0
    %479 = vperm.xlu0 %478, %v465
    %v480 = vpop.permute.xlu0 %479
    %v482 = vsub.f32 %v410, %v475
    %v483 = vsub.f32 %v450, %v480
    %v484 = vmul.f32 %v482, 1.442695
    %v485 = vpow.pop %v484
    %v486 = vmul.f32 %v483, 1.442695
    %v487 = vpow.pop %v486
    %v488 = vld [vmem:[#allocation4] sm:$0xff]
    %v489 = vld [vmem:[#allocation4 + $0x8] sm:$0xff]
    %v490 = vmul.f32 %v469, %v488
    %v491 = vmul.f32 %v471, %v489
    %v492 = vsel %vm457, %v485, 0.0
    %493 = vadd.xlane.f32.xlu0 %v492
    %v494 = vpop.xlane.xlu0 %493
    %v495 = vsel %vm457, %v487, 0.0
    %496 = vadd.xlane.f32.xlu0 %v495
    %v497 = vpop.xlane.xlu0 %496
    %v498 = vadd.f32 %v490, %v494
    %v499 = vadd.f32 %v491, %v497
    %vm500 = vcmask 7168
    %501 = vst.msk [vmem:[#allocation4] sm:$0xff] %vm500, %v498
    %502 = vst.msk [vmem:[#allocation4 + $0x8] sm:$0xff] %vm500, %v499
    %v503 = vld [vmem:[#allocation5] sm:$0xff]
    %v504 = vld [vmem:[#allocation5 + $0x8] sm:$0xff]
    %506 = vset.pattern.permute.xlu0 0
    %507 = vperm.xlu0 %506, %v469
    %v508 = vpop.permute.xlu0 %507
    %511 = vset.pattern.permute.xlu0 0
    %512 = vperm.xlu0 %511, %v471
    %v513 = vpop.permute.xlu0 %512
    %v515 = vmul.f32 %v508, %v503
    %v516 = vmul.f32 %v513, %v504
    %v517 = vpack.c.bf16 %v485, %v485
    %v518 = vpack.c.bf16 %v487, %v487
    %v520 = vsel %vm457, %v517, 0
    %vm522 = vcmask 1043456
    %v524 = vsel %vm522, %v371, 0
    %526 = vmatprep.subr.bf16.mxu0 0
    %527 = vmatpush1.bf16.msra.mxu0 %v524
    %528 = vmatprep.subr.bf16.mxu0 0
    %529 = vmatpush1.bf16.msra.mxu0 0
    %530 = vmatprep.subr.bf16.mxu0 0
    %531 = vmatpush1.bf16.msra.mxu0 0
    %532 = vmatprep.subr.bf16.mxu0 0
    %533 = vmatpush1.bf16.msra.mxu0 0
    %534 = vmatprep.subr.bf16.mxu0 0
    %535 = vmatpush1.bf16.msra.mxu0 0
    %536 = vmatprep.subr.bf16.mxu0 0
    %537 = vmatpush1.bf16.msra.mxu0 0
    %538 = vmatprep.subr.bf16.mxu0 0
    %539 = vmatpush1.bf16.msra.mxu0 0
    %540 = vmatprep.subr.bf16.mxu0 0
    %541 = vmatpush1.bf16.msra.mxu0 0
    %542 = vmatprep.subr.bf16.mxu0 0
    %543 = vmatpush1.bf16.msra.mxu0 0
    %544 = vmatprep.subr.bf16.mxu0 0
    %545 = vmatpush1.bf16.msra.mxu0 0
    %546 = vmatprep.subr.bf16.mxu0 0
    %547 = vmatpush1.bf16.msra.mxu0 0
    %548 = vmatprep.subr.bf16.mxu0 0
    %549 = vmatpush1.bf16.msra.mxu0 0
    %550 = vmatprep.subr.bf16.mxu0 0
    %551 = vmatpush1.bf16.msra.mxu0 0
    %552 = vmatprep.subr.bf16.mxu0 0
    %553 = vmatpush1.bf16.msra.mxu0 0
    %554 = vmatprep.subr.bf16.mxu0 0
    %555 = vmatpush1.bf16.msra.mxu0 0
    %556 = vmatprep.subr.bf16.mxu0 0
    %557 = vmatpush1.bf16.msra.mxu0 0
    %558 = vmatprep.mubr.bf16.mxu0 0
    %559 = vmatmul.mubr.bf16.gmra.mrb[0].mxu0 %v520
    %v560 = vpop.f32.mrb[0].mxu0
    %v561 = vadd.f32 0.0, %v560
    %v562 = vpop.f32.mrb[0].mxu0
    %v563 = vpop.f32.mrb[0].mxu0
    %v564 = vpop.f32.mrb[0].mxu0
    %565 = vdwg.mxu0
    %v567 = vsel %vm457, %v518, 0
    %v570 = vsel %vm522, %v372, 0
    %572 = vmatprep.subr.bf16.mxu0 0
    %573 = vmatpush1.bf16.msra.mxu0 %v570
    %574 = vmatprep.subr.bf16.mxu0 0
    %575 = vmatpush1.bf16.msra.mxu0 0
    %576 = vmatprep.subr.bf16.mxu0 0
    %577 = vmatpush1.bf16.msra.mxu0 0
    %578 = vmatprep.subr.bf16.mxu0 0
    %579 = vmatpush1.bf16.msra.mxu0 0
    %580 = vmatprep.subr.bf16.mxu0 0
    %581 = vmatpush1.bf16.msra.mxu0 0
    %582 = vmatprep.subr.bf16.mxu0 0
    %583 = vmatpush1.bf16.msra.mxu0 0
    %584 = vmatprep.subr.bf16.mxu0 0
    %585 = vmatpush1.bf16.msra.mxu0 0
    %586 = vmatprep.subr.bf16.mxu0 0
    %587 = vmatpush1.bf16.msra.mxu0 0
    %588 = vmatprep.subr.bf16.mxu0 0
    %589 = vmatpush1.bf16.msra.mxu0 0
    %590 = vmatprep.subr.bf16.mxu0 0
    %591 = vmatpush1.bf16.msra.mxu0 0
    %592 = vmatprep.subr.bf16.mxu0 0
    %593 = vmatpush1.bf16.msra.mxu0 0
    %594 = vmatprep.subr.bf16.mxu0 0
    %595 = vmatpush1.bf16.msra.mxu0 0
    %596 = vmatprep.subr.bf16.mxu0 0
    %597 = vmatpush1.bf16.msra.mxu0 0
    %598 = vmatprep.subr.bf16.mxu0 0
    %599 = vmatpush1.bf16.msra.mxu0 0
    %600 = vmatprep.subr.bf16.mxu0 0
    %601 = vmatpush1.bf16.msra.mxu0 0
    %602 = vmatprep.subr.bf16.mxu0 0
    %603 = vmatpush1.bf16.msra.mxu0 0
    %604 = vmatprep.mubr.bf16.mxu0 0
    %605 = vmatmul.mubr.bf16.gmra.mrb[0].mxu0 %v567
    %v606 = vpop.f32.mrb[0].mxu0
    %v607 = vadd.f32 0.0, %v606
    %v608 = vpop.f32.mrb[0].mxu0
    %v609 = vpop.f32.mrb[0].mxu0
    %v610 = vpop.f32.mrb[0].mxu0
    %611 = vdwg.mxu0
    %v612 = vadd.f32 %v515, %v561
    %v613 = vadd.f32 %v516, %v607
    %614 = vst [vmem:[#allocation5] sm:$0xff] %v612
    %615 = vst [vmem:[#allocation5 + $0x8] sm:$0xff] %v613
    %616 = vst.msk [vmem:[#allocation3] sm:$0xff] %vm500, %v464
    %617 = vst.msk [vmem:[#allocation3 + $0x8] sm:$0xff] %vm500, %v465
    // Predicated region
    $region46: #{tpu_custom_call.1} parent=1 // pred_check
      %p618 = pneg %p80
    $region47: #{tpu_custom_call.1} parent=1 // pred_check_branch
      %620 = sbr.rel (%p618) target = $region49
    $region48: #{tpu_custom_call.1} parent=1 // pred_region
      %v621 = vld [vmem:[#allocation4] sm:$0xff]
      %v622 = vld [vmem:[#allocation4 + $0x8] sm:$0xff]
      %v623 = vrcp.pop %v621
      %v624 = vrcp.pop %v622
      %v625 = vld [vmem:[#allocation6] sm:$0xff]
      %v626 = vld [vmem:[#allocation6 + $0x8] sm:$0xff]
      %627 = vst [vmem:[#allocation14] sm:$0xff] %v625
      %628 = vst [vmem:[#allocation14 + $0x10] sm:$0xff] %v626
      %v629 = vld [vmem:[#allocation5] sm:$0xff]
      %v630 = vld [vmem:[#allocation5 + $0x8] sm:$0xff]
      %632 = vset.pattern.permute.xlu0 0
      %633 = vperm.xlu0 %632, %v623
      %v634 = vpop.permute.xlu0 %633
      %637 = vset.pattern.permute.xlu0 0
      %638 = vperm.xlu0 %637, %v624
      %v639 = vpop.permute.xlu0 %638
      %v641 = vmul.f32 %v629, %v634
      %v642 = vmul.f32 %v630, %v639
      %643 = vst [vmem:[#allocation14 + $0x8] sm:$0xff] %v641
      %644 = vst [vmem:[#allocation14 + $0x18] sm:$0xff] %v642
    $region49: #{tpu_custom_call.1} parent=1 // pred_fallthru
      _
    // Predicated region
    $region50: #{tpu_custom_call.1} parent=1 // pred_check
      _
    $region51: #{tpu_custom_call.1} parent=1 // pred_check_branch
      %646 = sbr.rel (0) target = $region53
    $region52: #{tpu_custom_call.1} parent=1 // pred_region
      %s648 = ssub.s32 512, 512
      %649 = vsyncadd [#allocation8], %s648
      %s650 = sshll.u32 [#allocation14], 4
      %s651 = int_to_ptr.vmem [resolvable:$true] %s650
      %656 = dma.vmem_to_hbm [thread:$0]  %s651, 512, %s6, [#allocation8], 256, 256, 16
    $region53: #{tpu_custom_call.1} parent=1 // pred_fallthru
      _
    // Predicated region
    $region54: #{tpu_custom_call.1} parent=1 // pred_check
      _
    $region55: #{tpu_custom_call.1} parent=1 // pred_check_branch
      %658 = sbr.rel (0) target = $region57
    $region56: #{tpu_custom_call.1} parent=1 // pred_region
      %659 = dma.done [#allocation8], 512
    $region57: #{tpu_custom_call.1} parent=1 // pred_fallthru
      _
    %660 = vsyncpa [#allocation7], 1
    %661 = vsyncpa [#allocation10], 1
    %662 = vsyncpa [#allocation13], 1
    %663 = vsyncpa [#allocation8], 1

// kernel: tpu_custom_call.1
$region0: #{tpu_custom_call.1}
  #allocation0 [shape = 'u32[]', space=smem, size = 0x4, offset = 0x4, fixed_abs, tag = 'smem constant byte address 0x4 - core index']
  #allocation1 [shape = 'u32[144,128]{1,0:T(1,128)}', space=vmem, size = 0x12000, scoped, tag = 'internal scratch']
  #allocation2 [shape = 'bf16[2,8,128]{2,1,0:T(8,128)(2,1)}', space=vmem, size = 0x1000, scoped, tag = 'scratch operand']
  #allocation3 [shape = 'f32[2,8,1]{2,1,0:T(8,128)}', space=vmem, size = 0x2000, scoped, tag = 'scratch operand']
  #allocation4 [shape = 'f32[2,8,1]{2,1,0:T(8,128)}', space=vmem, size = 0x2000, scoped, tag = 'scratch operand']
  #allocation5 [shape = 'f32[2,8,128]{2,1,0:T(8,128)}', space=vmem, size = 0x2000, scoped, tag = 'scratch operand']
  %s0 = inlined_call_operand.hbm [shape: f32[2,8,128], index: 0, kind: input, shape index: {}]
  %s1 = inlined_call_operand.hbm [shape: bf16[2,8,128], index: 1, kind: input, shape index: {}]
  %s2 = inlined_call_operand.hbm [shape: bf16[128,128], index: 2, kind: input, shape index: {}]
  %s3 = inlined_call_operand.vmem [shape: f32[1,128], index: 3, kind: input, shape index: {}]
  %s4 = inlined_call_operand.hbm [shape: bf16[128,256], index: 4, kind: input, shape index: {}]
  %s5 = inlined_call_operand.vmem [shape: f32[1,256], index: 5, kind: input, shape index: {}]
  %s6 = inlined_call_operand.hbm [shape: f32[2,8,256], index: 6, kind: output, shape index: {}]
  %s7 = sld [smem:[#allocation0]]
  $region58: #{tpu_custom_call.1} parent=0
    _
  %s9 = ssub.s32 1, %s7
  %s10 = scalar_select 0, %s9, %s7
  $region1: #{tpu_custom_call.1} parent=0
    #allocation6 [shape = 'u8[8192]{0}', space=vmem, size = 0x2000, scoped, tag = 'input window, operand 0, single buffered']
    #allocation7 [shape = 's32[1]{0}', space=sflag, size = 0x4, scoped, tag = 'scoped memory for tpu_custom_call.1']
    #allocation8 [shape = 's32[1]{0}', space=sflag, size = 0x4, scoped, tag = 'scoped memory for tpu_custom_call.1']
    #allocation9 [shape = 'u8[4096]{0}', space=vmem, size = 0x1000, scoped, tag = 'input window, operand 1, single buffered']
    #allocation10 [shape = 's32[1]{0}', space=sflag, size = 0x4, scoped, tag = 'scoped memory for tpu_custom_call.1']
    #allocation11 [shape = 'u8[32768]{0}', space=vmem, size = 0x8000, scoped, tag = 'input window, operand 2, single buffered']
    #allocation12 [shape = 'u8[65536]{0}', space=vmem, size = 0x10000, scoped, tag = 'input window, operand 4, single buffered']
    #allocation13 [shape = 's32[1]{0}', space=sflag, size = 0x4, scoped, tag = 'scoped memory for tpu_custom_call.1']
    #allocation14 [shape = 'u8[16384]{0}', space=vmem, size = 0x4000, scoped, tag = 'output window, operand 0, single buffered']
    %11 = vsyncpa [#allocation7], 0
    %12 = vsyncpa [#allocation10], 0
    %13 = vsyncpa [#allocation13], 0
    %14 = vsyncpa [#allocation8], 0
    // Predicated region
    $region2: #{tpu_custom_call.1} parent=1 // pred_check
      _
    $region3: #{tpu_custom_call.1} parent=1 // pred_check_branch
      %16 = sbr.rel (0) target = $region5
    $region4: #{tpu_custom_call.1} parent=1 // pred_region
      %s18 = ssub.s32 256, 256
      %19 = vsyncadd [#allocation7], %s18
      %s20 = sshll.u32 [#allocation6], 4
      %s21 = int_to_ptr.vmem [resolvable:$true] %s20
      %26 = dma.hbm_to_vmem [thread:$0]  %s0, 256, %s21, [#allocation7], 128, 128, 8
    $region5: #{tpu_custom_call.1} parent=1 // pred_fallthru
      _
    // Predicated region
    $region6: #{tpu_custom_call.1} parent=1 // pred_check
      _
    $region7: #{tpu_custom_call.1} parent=1 // pred_check_branch
      %28 = sbr.rel (0) target = $region9
    $region8: #{tpu_custom_call.1} parent=1 // pred_region
      %s30 = ssub.s32 128, 128
      %31 = vsyncadd [#allocation10], %s30
      %s32 = sshll.u32 [#allocation9], 4
      %s33 = int_to_ptr.vmem [resolvable:$true] %s32
      %38 = dma.hbm_to_vmem [thread:$0]  %s1, 128, %s33, [#allocation10], 64, 64, 4
    $region9: #{tpu_custom_call.1} parent=1 // pred_fallthru
      _
    // Predicated region
    $region10: #{tpu_custom_call.1} parent=1 // pred_check
      _
    $region11: #{tpu_custom_call.1} parent=1 // pred_check_branch
      %40 = sbr.rel (0) target = $region13
    $region12: #{tpu_custom_call.1} parent=1 // pred_region
      %s42 = ssub.s32 1024, 1024
      %43 = vsyncadd [#allocation10], %s42
      %s44 = sshll.u32 [#allocation11], 4
      %s45 = int_to_ptr.vmem [resolvable:$true] %s44
      %50 = dma.hbm_to_vmem [thread:$0]  %s2, 1024, %s45, [#allocation10], 64, 64, 4
    $region13: #{tpu_custom_call.1} parent=1 // pred_fallthru
      _
    // Predicated region
    $region14: #{tpu_custom_call.1} parent=1 // pred_check
      _
    $region15: #{tpu_custom_call.1} parent=1 // pred_check_branch
      %52 = sbr.rel (0) target = $region17
    $region16: #{tpu_custom_call.1} parent=1 // pred_region
      _
    $region17: #{tpu_custom_call.1} parent=1 // pred_fallthru
      _
    // Predicated region
    $region18: #{tpu_custom_call.1} parent=1 // pred_check
      _
    $region19: #{tpu_custom_call.1} parent=1 // pred_check_branch
      %54 = sbr.rel (0) target = $region21
    $region20: #{tpu_custom_call.1} parent=1 // pred_region
      %s56 = ssub.s32 2048, 2048
      %57 = vsyncadd [#allocation13], %s56
      %s58 = sshll.u32 [#allocation12], 4
      %s59 = int_to_ptr.vmem [resolvable:$true] %s58
      %64 = dma.hbm_to_vmem [thread:$0]  %s4, 2048, %s59, [#allocation13], 128, 128, 8
    $region21: #{tpu_custom_call.1} parent=1 // pred_fallthru
      _
    // Predicated region
    $region22: #{tpu_custom_call.1} parent=1 // pred_check
      _
    $region23: #{tpu_custom_call.1} parent=1 // pred_check_branch
      %66 = sbr.rel (0) target = $region25
    $region24: #{tpu_custom_call.1} parent=1 // pred_region
      _
    $region25: #{tpu_custom_call.1} parent=1 // pred_fallthru
      _
    // Predicated region
    $region26: #{tpu_custom_call.1} parent=1 // pred_check
      _
    $region27: #{tpu_custom_call.1} parent=1 // pred_check_branch
      %68 = sbr.rel (0) target = $region29
    $region28: #{tpu_custom_call.1} parent=1 // pred_region
      %69 = dma.done [#allocation7], 256
    $region29: #{tpu_custom_call.1} parent=1 // pred_fallthru
      _
    // Predicated region
    $region30: #{tpu_custom_call.1} parent=1 // pred_check
      _
    $region31: #{tpu_custom_call.1} parent=1 // pred_check_branch
      %71 = sbr.rel (0) target = $region33
    $region32: #{tpu_custom_call.1} parent=1 // pred_region
      %72 = dma.done [#allocation10], 128
    $region33: #{tpu_custom_call.1} parent=1 // pred_fallthru
      _
    // Predicated region
    $region34: #{tpu_custom_call.1} parent=1 // pred_check
      _
    $region35: #{tpu_custom_call.1} parent=1 // pred_check_branch
      %74 = sbr.rel (0) target = $region37
    $region36: #{tpu_custom_call.1} parent=1 // pred_region
      %75 = dma.done [#allocation10], 1024
    $region37: #{tpu_custom_call.1} parent=1 // pred_fallthru
      _
    // Predicated region
    $region38: #{tpu_custom_call.1} parent=1 // pred_check
      _
    $region39: #{tpu_custom_call.1} parent=1 // pred_check_branch
      %77 = sbr.rel (0) target = $region41
    $region40: #{tpu_custom_call.1} parent=1 // pred_region
      %78 = dma.done [#allocation13], 2048
    $region41: #{tpu_custom_call.1} parent=1 // pred_fallthru
      _
    %p80 = scmp.eq.s32.totalorder 0, 0
    // Predicated region
    $region42: #{tpu_custom_call.1} parent=1 // pred_check
      %p81 = pneg %p80
    $region43: #{tpu_custom_call.1} parent=1 // pred_check_branch
      %83 = sbr.rel (%p81) target = $region45
    $region44: #{tpu_custom_call.1} parent=1 // pred_region
      %v84 = vld [vmem:[#allocation6] sm:$0xff]
      %v85 = vld [vmem:[#allocation6 + $0x8] sm:$0xff]
      %v86 = vpack.c.bf16 %v85, %v84
      %v87 = vld [vmem:[#allocation11] sm:$0xf]
      %v88 = vld [vmem:[#allocation11 + $0x4] sm:$0xf]
      %v89 = vld [vmem:[#allocation11 + $0x8] sm:$0xf]
      %v90 = vld [vmem:[#allocation11 + $0xc] sm:$0xf]
      %v91 = vld [vmem:[#allocation11 + $0x10] sm:$0xf]
      %v92 = vld [vmem:[#allocation11 + $0x14] sm:$0xf]
      %v93 = vld [vmem:[#allocation11 + $0x18] sm:$0xf]
      %v94 = vld [vmem:[#allocation11 + $0x1c] sm:$0xf]
      %v95 = vld [vmem:[#allocation11 + $0x20] sm:$0xf]
      %v96 = vld [vmem:[#allocation11 + $0x24] sm:$0xf]
      %v97 = vld [vmem:[#allocation11 + $0x28] sm:$0xf]
      %v98 = vld [vmem:[#allocation11 + $0x2c] sm:$0xf]
      %v99 = vld [vmem:[#allocation11 + $0x30] sm:$0xf]
      %v100 = vld [vmem:[#allocation11 + $0x34] sm:$0xf]
      %v101 = vld [vmem:[#allocation11 + $0x38] sm:$0xf]
      %v102 = vld [vmem:[#allocation11 + $0x3c] sm:$0xf]
      %v103 = vld [vmem:[%s3] sm:$0x1]
      %v105 = vlaneseq
      %v106 = vshrl.u32 %v105, 7
      %v107 = vsub.s32 0, %v106
      %v108 = vrot.slane %v103, %v107
      %v126 = vunpack.c.l.b16 %v87
      %v127 = vunpack.c.l.b16 %v88
      %v128 = vunpack.c.l.b16 %v89
      %v129 = vunpack.c.l.b16 %v90
      %v130 = vunpack.c.l.b16 %v91
      %v131 = vunpack.c.l.b16 %v92
      %v132 = vunpack.c.l.b16 %v93
      %v133 = vunpack.c.l.b16 %v94
      %v134 = vunpack.c.l.b16 %v95
      %v135 = vunpack.c.l.b16 %v96
      %v136 = vunpack.c.l.b16 %v97
      %v137 = vunpack.c.l.b16 %v98
      %v138 = vunpack.c.l.b16 %v99
      %v139 = vunpack.c.l.b16 %v100
      %v140 = vunpack.c.l.b16 %v101
      %v141 = vunpack.c.l.b16 %v102
      %v142 = vpack.c.b16 %v127, %v126
      %v143 = vpack.c.b16 %v129, %v128
      %v144 = vpack.c.b16 %v131, %v130
      %v145 = vpack.c.b16 %v133, %v132
      %v146 = vpack.c.b16 %v135, %v134
      %v147 = vpack.c.b16 %v137, %v136
      %v148 = vpack.c.b16 %v139, %v138
      %v149 = vpack.c.b16 %v141, %v140
      %158 = vmatprep.subr.bf16.mxu0 0
      %159 = vmatpush1.bf16.msra.mxu0 %v142
      %160 = vmatprep.subr.bf16.mxu0 0
      %161 = vmatpush1.bf16.msra.mxu0 %v143
      %162 = vmatprep.subr.bf16.mxu0 0
      %163 = vmatpush1.bf16.msra.mxu0 %v144
      %164 = vmatprep.subr.bf16.mxu0 0
      %165 = vmatpush1.bf16.msra.mxu0 %v145
      %166 = vmatprep.subr.bf16.mxu0 0
      %167 = vmatpush1.bf16.msra.mxu0 %v146
      %168 = vmatprep.subr.bf16.mxu0 0
      %169 = vmatpush1.bf16.msra.mxu0 %v147
      %170 = vmatprep.subr.bf16.mxu0 0
      %171 = vmatpush1.bf16.msra.mxu0 %v148
      %172 = vmatprep.subr.bf16.mxu0 0
      %173 = vmatpush1.bf16.msra.mxu0 %v149
      %174 = vmatprep.subr.bf16.mxu0 0
      %175 = vmatpush1.bf16.msra.mxu0 0
      %176 = vmatprep.subr.bf16.mxu0 0
      %177 = vmatpush1.bf16.msra.mxu0 0
      %178 = vmatprep.subr.bf16.mxu0 0
      %179 = vmatpush1.bf16.msra.mxu0 0
      %180 = vmatprep.subr.bf16.mxu0 0
      %181 = vmatpush1.bf16.msra.mxu0 0
      %182 = vmatprep.subr.bf16.mxu0 0
      %183 = vmatpush1.bf16.msra.mxu0 0
      %184 = vmatprep.subr.bf16.mxu0 0
      %185 = vmatpush1.bf16.msra.mxu0 0
      %186 = vmatprep.subr.bf16.mxu0 0
      %187 = vmatpush1.bf16.msra.mxu0 0
      %188 = vmatprep.subr.bf16.mxu0 0
      %189 = vmatpush1.bf16.msra.mxu0 0
      %190 = vmatprep.mubr.bf16.mxu0 0
      %191 = vmatmul.mubr.bf16.gmra.mrb[0].mxu0 %v86
      %v192 = vpop.f32.mrb[0].mxu0
      %v193 = vadd.f32 %v108, %v192
      %v194 = vpop.f32.mrb[0].mxu0
      %v195 = vpop.f32.mrb[0].mxu0
      %v196 = vadd.f32 %v108, %v195
      %v197 = vpop.f32.mrb[0].mxu0
      %198 = vdwg.mxu0
      %v199 = vpack.c.bf16 %v193, %v193
      %v200 = vpack.c.bf16 %v196, %v196
      %201 = vst [vmem:[#allocation2] sm:$0xf] %v199
      %202 = vst [vmem:[#allocation2 + $0x4] sm:$0xf] %v200
      %vm203 = vcmask 7168
      %204 = vst.msk [vmem:[#allocation3] sm:$0xff] %vm203, -inf
      %205 = vst.msk [vmem:[#allocation3 + $0x8] sm:$0xff] %vm203, -inf
      %206 = vst.msk [vmem:[#allocation4] sm:$0xff] %vm203, 0.0
      %207 = vst.msk [vmem:[#allocation4 + $0x8] sm:$0xff] %vm203, 0.0
      %208 = vst [vmem:[#allocation5] sm:$0xff] 0.0
      %209 = vst [vmem:[#allocation5 + $0x8] sm:$0xff] 0.0
    $region45: #{tpu_custom_call.1} parent=1 // pred_fallthru
      _
    %v210 = vld [vmem:[#allocation9] sm:$0xf]
    %v211 = vld [vmem:[#allocation9 + $0x4] sm:$0xf]
    %v212 = vld [vmem:[#allocation12] sm:$0xff]
    %v213 = vld [vmem:[#allocation12 + $0x8] sm:$0xff]
    %v214 = vld [vmem:[#allocation12 + $0x10] sm:$0xff]
    %v215 = vld [vmem:[#allocation12 + $0x18] sm:$0xff]
    %v216 = vld [vmem:[#allocation12 + $0x20] sm:$0xff]
    %v217 = vld [vmem:[#allocation12 + $0x28] sm:$0xff]
    %v218 = vld [vmem:[#allocation12 + $0x30] sm:$0xff]
    %v219 = vld [vmem:[#allocation12 + $0x38] sm:$0xff]
    %v220 = vld [vmem:[#allocation12 + $0x40] sm:$0xff]
    %v221 = vld [vmem:[#allocation12 + $0x48] sm:$0xff]
    %v222 = vld [vmem:[#allocation12 + $0x50] sm:$0xff]
    %v223 = vld [vmem:[#allocation12 + $0x58] sm:$0xff]
    %v224 = vld [vmem:[#allocation12 + $0x60] sm:$0xff]
    %v225 = vld [vmem:[#allocation12 + $0x68] sm:$0xff]
    %v226 = vld [vmem:[#allocation12 + $0x70] sm:$0xff]
    %v227 = vld [vmem:[#allocation12 + $0x78] sm:$0xff]
    %v228 = vld [vmem:[%s5] sm:$0x3]
    %v230 = vlaneseq
    %v231 = vshrl.u32 %v230, 7
    %v232 = vsub.s32 0, %v231
    %v233 = vrot.slane %v228, %v232
    %v234 = vlaneseq
    %v235 = vshrl.u32 %v234, 7
    %v236 = vsub.s32 1, %v235
    %v237 = vrot.slane %v228, %v236
    %v242 = vunpack.c.l.b16 %v210
    %v243 = vunpack.c.l.b16 %v211
    %v244 = vpack.c.b16 %v243, %v242
    %v262 = vunpack.c.l.b16 %v212
    %v263 = vunpack.c.h.b16 %v212
    %v264 = vunpack.c.l.b16 %v213
    %v265 = vunpack.c.h.b16 %v213
    %v266 = vunpack.c.l.b16 %v214
    %v267 = vunpack.c.h.b16 %v214
    %v268 = vunpack.c.l.b16 %v215
    %v269 = vunpack.c.h.b16 %v215
    %v270 = vunpack.c.l.b16 %v216
    %v271 = vunpack.c.h.b16 %v216
    %v272 = vunpack.c.l.b16 %v217
    %v273 = vunpack.c.h.b16 %v217
    %v274 = vunpack.c.l.b16 %v218
    %v275 = vunpack.c.h.b16 %v218
    %v276 = vunpack.c.l.b16 %v219
    %v277 = vunpack.c.h.b16 %v219
    %v278 = vunpack.c.l.b16 %v220
    %v279 = vunpack.c.h.b16 %v220
    %v280 = vunpack.c.l.b16 %v221
    %v281 = vunpack.c.h.b16 %v221
    %v282 = vunpack.c.l.b16 %v222
    %v283 = vunpack.c.h.b16 %v222
    %v284 = vunpack.c.l.b16 %v223
    %v285 = vunpack.c.h.b16 %v223
    %v286 = vunpack.c.l.b16 %v224
    %v287 = vunpack.c.h.b16 %v224
    %v288 = vunpack.c.l.b16 %v225
    %v289 = vunpack.c.h.b16 %v225
    %v290 = vunpack.c.l.b16 %v226
    %v291 = vunpack.c.h.b16 %v226
    %v292 = vunpack.c.l.b16 %v227
    %v293 = vunpack.c.h.b16 %v227
    %v294 = vpack.c.b16 %v264, %v262
    %v295 = vpack.c.b16 %v265, %v263
    %v296 = vpack.c.b16 %v268, %v266
    %v297 = vpack.c.b16 %v269, %v267
    %v298 = vpack.c.b16 %v272, %v270
    %v299 = vpack.c.b16 %v273, %v271
    %v300 = vpack.c.b16 %v276, %v274
    %v301 = vpack.c.b16 %v277, %v275
    %v302 = vpack.c.b16 %v280, %v278
    %v303 = vpack.c.b16 %v281, %v279
    %v304 = vpack.c.b16 %v284, %v282
    %v305 = vpack.c.b16 %v285, %v283
    %v306 = vpack.c.b16 %v288, %v286
    %v307 = vpack.c.b16 %v289, %v287
    %v308 = vpack.c.b16 %v292, %v290
    %v309 = vpack.c.b16 %v293, %v291
    %326 = vmatprep.subr.bf16.mxu0 %v295
    %327 = vmatpush1.bf16.msra.mxu0 %v294
    %328 = vmatprep.subr.bf16.mxu0 %v297
    %329 = vmatpush1.bf16.msra.mxu0 %v296
    %330 = vmatprep.subr.bf16.mxu0 %v299
    %331 = vmatpush1.bf16.msra.mxu0 %v298
    %332 = vmatprep.subr.bf16.mxu0 %v301
    %333 = vmatpush1.bf16.msra.mxu0 %v300
    %334 = vmatprep.subr.bf16.mxu0 %v303
    %335 = vmatpush1.bf16.msra.mxu0 %v302
    %336 = vmatprep.subr.bf16.mxu0 %v305
    %337 = vmatpush1.bf16.msra.mxu0 %v304
    %338 = vmatprep.subr.bf16.mxu0 %v307
    %339 = vmatpush1.bf16.msra.mxu0 %v306
    %340 = vmatprep.subr.bf16.mxu0 %v309
    %341 = vmatpush1.bf16.msra.mxu0 %v308
    %342 = vmatprep.subr.bf16.mxu0 0
    %343 = vmatpush1.bf16.msra.mxu0 0
    %344 = vmatprep.subr.bf16.mxu0 0
    %345 = vmatpush1.bf16.msra.mxu0 0
    %346 = vmatprep.subr.bf16.mxu0 0
    %347 = vmatpush1.bf16.msra.mxu0 0
    %348 = vmatprep.subr.bf16.mxu0 0
    %349 = vmatpush1.bf16.msra.mxu0 0
    %350 = vmatprep.subr.bf16.mxu0 0
    %351 = vmatpush1.bf16.msra.mxu0 0
    %352 = vmatprep.subr.bf16.mxu0 0
    %353 = vmatpush1.bf16.msra.mxu0 0
    %354 = vmatprep.subr.bf16.mxu0 0
    %355 = vmatpush1.bf16.msra.mxu0 0
    %356 = vmatprep.subr.bf16.mxu0 0
    %357 = vmatpush1.bf16.msra.mxu0 0
    %358 = vmatprep.mubr.bf16.mxu0 0
    %359 = vmatmul.mubr.bf16.gmra.mrb[0].mxu0 %v244
    %v360 = vpop.f32.mrb[0].mxu0
    %v361 = vadd.f32 %v233, %v360
    %v362 = vpop.f32.mrb[0].mxu0
    %v363 = vadd.f32 %v237, %v362
    %v364 = vpop.f32.mrb[0].mxu0
    %v365 = vadd.f32 %v233, %v364
    %v366 = vpop.f32.mrb[0].mxu0
    %v367 = vadd.f32 %v237, %v366
    %368 = vdwg.mxu0
    %v369 = vpack.c.bf16 %v361, %v361
    %v370 = vpack.c.bf16 %v365, %v365
    %v371 = vpack.c.bf16 %v363, %v363
    %v372 = vpack.c.bf16 %v367, %v367
    %v373 = vld [vmem:[#allocation2] sm:$0xf]
    %v374 = vld [vmem:[#allocation2 + $0x4] sm:$0xf]
    %375 = vmatprep.subr.bf16.mxu0 0
    %376 = vmatpush1.bf16.xpose.msra.mxu0 %v369
    %377 = vmatprep.subr.bf16.mxu0 0
    %378 = vmatpush1.bf16.xpose.msra.mxu0 0
    %379 = vmatprep.subr.bf16.mxu0 0
    %380 = vmatpush1.bf16.xpose.msra.mxu0 0
    %381 = vmatprep.subr.bf16.mxu0 0
    %382 = vmatpush1.bf16.xpose.msra.mxu0 0
    %383 = vmatprep.subr.bf16.mxu0 0
    %384 = vmatpush1.bf16.xpose.msra.mxu0 0
    %385 = vmatprep.subr.bf16.mxu0 0
    %386 = vmatpush1.bf16.xpose.msra.mxu0 0
    %387 = vmatprep.subr.bf16.mxu0 0
    %388 = vmatpush1.bf16.xpose.msra.mxu0 0
    %389 = vmatprep.subr.bf16.mxu0 0
    %390 = vmatpush1.bf16.xpose.msra.mxu0 0
    %391 = vmatprep.subr.bf16.mxu0 0
    %392 = vmatpush1.bf16.xpose.msra.mxu0 0
    %393 = vmatprep.subr.bf16.mxu0 0
    %394 = vmatpush1.bf16.xpose.msra.mxu0 0
    %395 = vmatprep.subr.bf16.mxu0 0
    %396 = vmatpush1.bf16.xpose.msra.mxu0 0
    %397 = vmatprep.subr.bf16.mxu0 0
    %398 = vmatpush1.bf16.xpose.msra.mxu0 0
    %399 = vmatprep.subr.bf16.mxu0 0
    %400 = vmatpush1.bf16.xpose.msra.mxu0 0
    %401 = vmatprep.subr.bf16.mxu0 0
    %402 = vmatpush1.bf16.xpose.msra.mxu0 0
    %403 = vmatprep.subr.bf16.mxu0 0
    %404 = vmatpush1.bf16.xpose.msra.mxu0 0
    %405 = vmatprep.subr.bf16.mxu0 0
    %406 = vmatpush1.bf16.xpose.msra.mxu0 0
    %407 = vmatprep.mubr.bf16.mxu0 0
    %408 = vmatmul.mubr.bf16.gmra.mrb[0].mxu0 %v373
    %v409 = vpop.f32.mrb[0].mxu0
    %v410 = vadd.f32 0.0, %v409
    %v411 = vpop.f32.mrb[0].mxu0
    %v412 = vpop.f32.mrb[0].mxu0
    %v413 = vpop.f32.mrb[0].mxu0
    %414 = vdwg.mxu0
    %415 = vmatprep.subr.bf16.mxu0 0
    %416 = vmatpush1.bf16.xpose.msra.mxu0 %v370
    %417 = vmatprep.subr.bf16.mxu0 0
    %418 = vmatpush1.bf16.xpose.msra.mxu0 0
    %419 = vmatprep.subr.bf16.mxu0 0
    %420 = vmatpush1.bf16.xpose.msra.mxu0 0
    %421 = vmatprep.subr.bf16.mxu0 0
    %422 = vmatpush1.bf16.xpose.msra.mxu0 0
    %423 = vmatprep.subr.bf16.mxu0 0
    %424 = vmatpush1.bf16.xpose.msra.mxu0 0
    %425 = vmatprep.subr.bf16.mxu0 0
    %426 = vmatpush1.bf16.xpose.msra.mxu0 0
    %427 = vmatprep.subr.bf16.mxu0 0
    %428 = vmatpush1.bf16.xpose.msra.mxu0 0
    %429 = vmatprep.subr.bf16.mxu0 0
    %430 = vmatpush1.bf16.xpose.msra.mxu0 0
    %431 = vmatprep.subr.bf16.mxu0 0
    %432 = vmatpush1.bf16.xpose.msra.mxu0 0
    %433 = vmatprep.subr.bf16.mxu0 0
    %434 = vmatpush1.bf16.xpose.msra.mxu0 0
    %435 = vmatprep.subr.bf16.mxu0 0
    %436 = vmatpush1.bf16.xpose.msra.mxu0 0
    %437 = vmatprep.subr.bf16.mxu0 0
    %438 = vmatpush1.bf16.xpose.msra.mxu0 0
    %439 = vmatprep.subr.bf16.mxu0 0
    %440 = vmatpush1.bf16.xpose.msra.mxu0 0
    %441 = vmatprep.subr.bf16.mxu0 0
    %442 = vmatpush1.bf16.xpose.msra.mxu0 0
    %443 = vmatprep.subr.bf16.mxu0 0
    %444 = vmatpush1.bf16.xpose.msra.mxu0 0
    %445 = vmatprep.subr.bf16.mxu0 0
    %446 = vmatpush1.bf16.xpose.msra.mxu0 0
    %447 = vmatprep.mubr.bf16.mxu0 0
    %448 = vmatmul.mubr.bf16.gmra.mrb[0].mxu0 %v374
    %v449 = vpop.f32.mrb[0].mxu0
    %v450 = vadd.f32 0.0, %v449
    %v451 = vpop.f32.mrb[0].mxu0
    %v452 = vpop.f32.mrb[0].mxu0
    %v453 = vpop.f32.mrb[0].mxu0
    %454 = vdwg.mxu0
    %v455 = vld [vmem:[#allocation3] sm:$0xff]
    %v456 = vld [vmem:[#allocation3 + $0x8] sm:$0xff]
    %vm457 = vcmask 64512
    %v458 = vsel %vm457, %v410, -inf
    %459 = vmax.xlane.f32.xlu0 %v458
    %v460 = vpop.xlane.xlu0 %459
    %v461 = vsel %vm457, %v450, -inf
    %462 = vmax.xlane.f32.xlu0 %v461
    %v463 = vpop.xlane.xlu0 %462
    %v464 = vmax.f32 %v455, %v460
    %v465 = vmax.f32 %v456, %v463
    %v466 = vsub.f32 %v455, %v464
    %v467 = vsub.f32 %v456, %v465
    %v468 = vmul.f32 %v466, 1.442695
    %v469 = vpow.pop %v468
    %v470 = vmul.f32 %v467, 1.442695
    %v471 = vpow.pop %v470
    %473 = vset.pattern.permute.xlu0 0
    %474 = vperm.xlu0 %473, %v464
    %v475 = vpop.permute.xlu0 %474
    %478 = vset.pattern.permute.xlu0 0
    %479 = vperm.xlu0 %478, %v465
    %v480 = vpop.permute.xlu0 %479
    %v482 = vsub.f32 %v410, %v475
    %v483 = vsub.f32 %v450, %v480
    %v484 = vmul.f32 %v482, 1.442695
    %v485 = vpow.pop %v484
    %v486 = vmul.f32 %v483, 1.442695
    %v487 = vpow.pop %v486
    %v488 = vld [vmem:[#allocation4] sm:$0xff]
    %v489 = vld [vmem:[#allocation4 + $0x8] sm:$0xff]
    %v490 = vmul.f32 %v469, %v488
    %v491 = vmul.f32 %v471, %v489
    %v492 = vsel %vm457, %v485, 0.0
    %493 = vadd.xlane.f32.xlu0 %v492
    %v494 = vpop.xlane.xlu0 %493
    %v495 = vsel %vm457, %v487, 0.0
    %496 = vadd.xlane.f32.xlu0 %v495
    %v497 = vpop.xlane.xlu0 %496
    %v498 = vadd.f32 %v490, %v494
    %v499 = vadd.f32 %v491, %v497
    %vm500 = vcmask 7168
    %501 = vst.msk [vmem:[#allocation4] sm:$0xff] %vm500, %v498
    %502 = vst.msk [vmem:[#allocation4 + $0x8] sm:$0xff] %vm500, %v499
    %v503 = vld [vmem:[#allocation5] sm:$0xff]
    %v504 = vld [vmem:[#allocation5 + $0x8] sm:$0xff]
    %506 = vset.pattern.permute.xlu0 0
    %507 = vperm.xlu0 %506, %v469
    %v508 = vpop.permute.xlu0 %507
    %511 = vset.pattern.permute.xlu0 0
    %512 = vperm.xlu0 %511, %v471
    %v513 = vpop.permute.xlu0 %512
    %v515 = vmul.f32 %v508, %v503
    %v516 = vmul.f32 %v513, %v504
    %v517 = vpack.c.bf16 %v485, %v485
    %v518 = vpack.c.bf16 %v487, %v487
    %v520 = vsel %vm457, %v517, 0
    %vm522 = vcmask 1043456
    %v524 = vsel %vm522, %v371, 0
    %526 = vmatprep.subr.bf16.mxu0 0
    %527 = vmatpush1.bf16.msra.mxu0 %v524
    %528 = vmatprep.subr.bf16.mxu0 0
    %529 = vmatpush1.bf16.msra.mxu0 0
    %530 = vmatprep.subr.bf16.mxu0 0
    %531 = vmatpush1.bf16.msra.mxu0 0
    %532 = vmatprep.subr.bf16.mxu0 0
    %533 = vmatpush1.bf16.msra.mxu0 0
    %534 = vmatprep.subr.bf16.mxu0 0
    %535 = vmatpush1.bf16.msra.mxu0 0
    %536 = vmatprep.subr.bf16.mxu0 0
    %537 = vmatpush1.bf16.msra.mxu0 0
    %538 = vmatprep.subr.bf16.mxu0 0
    %539 = vmatpush1.bf16.msra.mxu0 0
    %540 = vmatprep.subr.bf16.mxu0 0
    %541 = vmatpush1.bf16.msra.mxu0 0
    %542 = vmatprep.subr.bf16.mxu0 0
    %543 = vmatpush1.bf16.msra.mxu0 0
    %544 = vmatprep.subr.bf16.mxu0 0
    %545 = vmatpush1.bf16.msra.mxu0 0
    %546 = vmatprep.subr.bf16.mxu0 0
    %547 = vmatpush1.bf16.msra.mxu0 0
    %548 = vmatprep.subr.bf16.mxu0 0
    %549 = vmatpush1.bf16.msra.mxu0 0
    %550 = vmatprep.subr.bf16.mxu0 0
    %551 = vmatpush1.bf16.msra.mxu0 0
    %552 = vmatprep.subr.bf16.mxu0 0
    %553 = vmatpush1.bf16.msra.mxu0 0
    %554 = vmatprep.subr.bf16.mxu0 0
    %555 = vmatpush1.bf16.msra.mxu0 0
    %556 = vmatprep.subr.bf16.mxu0 0
    %557 = vmatpush1.bf16.msra.mxu0 0
    %558 = vmatprep.mubr.bf16.mxu0 0
    %559 = vmatmul.mubr.bf16.gmra.mrb[0].mxu0 %v520
    %v560 = vpop.f32.mrb[0].mxu0
    %v561 = vadd.f32 0.0, %v560
    %v562 = vpop.f32.mrb[0].mxu0
    %v563 = vpop.f32.mrb[0].mxu0
    %v564 = vpop.f32.mrb[0].mxu0
    %565 = vdwg.mxu0
    %v567 = vsel %vm457, %v518, 0
    %v570 = vsel %vm522, %v372, 0
    %572 = vmatprep.subr.bf16.mxu0 0
    %573 = vmatpush1.bf16.msra.mxu0 %v570
    %574 = vmatprep.subr.bf16.mxu0 0
    %575 = vmatpush1.bf16.msra.mxu0 0
    %576 = vmatprep.subr.bf16.mxu0 0
    %577 = vmatpush1.bf16.msra.mxu0 0
    %578 = vmatprep.subr.bf16.mxu0 0
    %579 = vmatpush1.bf16.msra.mxu0 0
    %580 = vmatprep.subr.bf16.mxu0 0
    %581 = vmatpush1.bf16.msra.mxu0 0
    %582 = vmatprep.subr.bf16.mxu0 0
    %583 = vmatpush1.bf16.msra.mxu0 0
    %584 = vmatprep.subr.bf16.mxu0 0
    %585 = vmatpush1.bf16.msra.mxu0 0
    %586 = vmatprep.subr.bf16.mxu0 0
    %587 = vmatpush1.bf16.msra.mxu0 0
    %588 = vmatprep.subr.bf16.mxu0 0
    %589 = vmatpush1.bf16.msra.mxu0 0
    %590 = vmatprep.subr.bf16.mxu0 0
    %591 = vmatpush1.bf16.msra.mxu0 0
    %592 = vmatprep.subr.bf16.mxu0 0
    %593 = vmatpush1.bf16.msra.mxu0 0
    %594 = vmatprep.subr.bf16.mxu0 0
    %595 = vmatpush1.bf16.msra.mxu0 0
    %596 = vmatprep.subr.bf16.mxu0 0
    %597 = vmatpush1.bf16.msra.mxu0 0
    %598 = vmatprep.subr.bf16.mxu0 0
    %599 = vmatpush1.bf16.msra.mxu0 0
    %600 = vmatprep.subr.bf16.mxu0 0
    %601 = vmatpush1.bf16.msra.mxu0 0
    %602 = vmatprep.subr.bf16.mxu0 0
    %603 = vmatpush1.bf16.msra.mxu0 0
    %604 = vmatprep.mubr.bf16.mxu0 0
    %605 = vmatmul.mubr.bf16.gmra.mrb[0].mxu0 %v567
    %v606 = vpop.f32.mrb[0].mxu0
    %v607 = vadd.f32 0.0, %v606
    %v608 = vpop.f32.mrb[0].mxu0
    %v609 = vpop.f32.mrb[0].mxu0
    %v610 = vpop.f32.mrb[0].mxu0
    %611 = vdwg.mxu0
    %v612 = vadd.f32 %v515, %v561
    %v613 = vadd.f32 %v516, %v607
    %614 = vst [vmem:[#allocation5] sm:$0xff] %v612
    %615 = vst [vmem:[#allocation5 + $0x8] sm:$0xff] %v613
    %616 = vst.msk [vmem:[#allocation3] sm:$0xff] %vm500, %v464
    %617 = vst.msk [vmem:[#allocation3 + $0x8] sm:$0xff] %vm500, %v465
    // Predicated region
    $region46: #{tpu_custom_call.1} parent=1 // pred_check
      %p618 = pneg %p80
    $region47: #{tpu_custom_call.1} parent=1 // pred_check_branch
      %620 = sbr.rel (%p618) target = $region49
    $region48: #{tpu_custom_call.1} parent=1 // pred_region
      %v621 = vld [vmem:[#allocation4] sm:$0xff]
      %v622 = vld [vmem:[#allocation4 + $0x8] sm:$0xff]
      %v623 = vrcp.pop %v621
      %v624 = vrcp.pop %v622
      %v625 = vld [vmem:[#allocation6] sm:$0xff]
      %v626 = vld [vmem:[#allocation6 + $0x8] sm:$0xff]
      %627 = vst [vmem:[#allocation14] sm:$0xff] %v625
      %628 = vst [vmem:[#allocation14 + $0x10] sm:$0xff] %v626
      %v629 = vld [vmem:[#allocation5] sm:$0xff]
      %v630 = vld [vmem:[#allocation5 + $0x8] sm:$0xff]
      %632 = vset.pattern.permute.xlu0 0
      %633 = vperm.xlu0 %632, %v623
      %v634 = vpop.permute.xlu0 %633
      %637 = vset.pattern.permute.xlu0 0
      %638 = vperm.xlu0 %637, %v624
      %v639 = vpop.permute.xlu0 %638
      %v641 = vmul.f32 %v629, %v634
      %v642 = vmul.f32 %v630, %v639
      %643 = vst [vmem:[#allocation14 + $0x8] sm:$0xff] %v641
      %644 = vst [vmem:[#allocation14 + $0x18] sm:$0xff] %v642
    $region49: #{tpu_custom_call.1} parent=1 // pred_fallthru
      _
    // Predicated region
    $region50: #{tpu_custom_call.1} parent=1 // pred_check
      _
    $region51: #{tpu_custom_call.1} parent=1 // pred_check_branch
      %646 = sbr.rel (0) target = $region53
    $region52: #{tpu_custom_call.1} parent=1 // pred_region
      %s648 = ssub.s32 512, 512
      %649 = vsyncadd [#allocation8], %s648
      %s650 = sshll.u32 [#allocation14], 4
      %s651 = int_to_ptr.vmem [resolvable:$true] %s650
      %656 = dma.vmem_to_hbm [thread:$0]  %s651, 512, %s6, [#allocation8], 256, 256, 16
    $region53: #{tpu_custom_call.1} parent=1 // pred_fallthru
      _
    // Predicated region
    $region54: #{tpu_custom_call.1} parent=1 // pred_check
      _
    $region55: #{tpu_custom_call.1} parent=1 // pred_check_branch
      %658 = sbr.rel (0) target = $region57
    $region56: #{tpu_custom_call.1} parent=1 // pred_region
      %659 = dma.done [#allocation8], 512
    $region57: #{tpu_custom_call.1} parent=1 // pred_fallthru
      _
    %660 = vsyncpa [#allocation7], 1
    %661 = vsyncpa [#allocation10], 1
    %662 = vsyncpa [#allocation13], 1
    %663 = vsyncpa [#allocation8], 1

</llo_original>
